<compile_context>
chip_gen: v7x
topology: tpu7x:2x2x1
jax: 0.10.0
libtpu: 0.0.40
codegen_flags: <defaults>
</compile_context>

<pallas_src>
import functools
import math

import jax
import jax.numpy as jnp
from jax.experimental import pallas as pl
from jax.experimental.pallas import tpu as pltpu


def _mha_kernel(x_ref, wq_ref, bq_ref, wk_ref, bk_ref, wv_ref, bv_ref,
                wo_ref, bo_ref, g_ref, b_ref, out_ref, kT_scr, v_scr,
                *, num_heads, head_dim, tile_q, ln_eps):
    """Fused self-attention block for one (batch, query-tile) grid point.

    x_ref   : (1, S, H)   f32   full sequence of the current batch element
    wq_ref  : (H, H)      bf16  query weight, pre-scaled by 1/sqrt(head_dim)
    wk/wv   : (H, H)      bf16
    wo_ref  : (nh, hd, H) bf16  dense (output-projection) weight, per-head slabs
    b*_ref  : (1, H)      f32   biases (bq pre-scaled), LN gamma/beta
    out_ref : (1, TQ, H)  f32
    kT_scr  : (nh, hd, S) bf16  VMEM scratch, persists across query tiles
    v_scr   : (nh, S, hd) bf16  VMEM scratch, persists across query tiles
    """
    qi = pl.program_id(1)

    # ---- K / V projection: once per batch element, reused by all q tiles ----
    @pl.when(qi == 0)
    def _project_kv():
        xf = x_ref[0].astype(jnp.bfloat16)                               # (S, H)
        k_full = jnp.dot(xf, wk_ref[...],
                         preferred_element_type=jnp.float32) + bk_ref[...]
        v_full = jnp.dot(xf, wv_ref[...],
                         preferred_element_type=jnp.float32) + bv_ref[...]
        for h in range(num_heads):
            sl = slice(h * head_dim, (h + 1) * head_dim)
            # Store K pre-transposed so QK^T on the hot path needs no
            # per-tile operand transpose and has a lane-dense S output.
            kT_scr[h] = k_full[:, sl].T.astype(kT_scr.dtype)             # (hd, S)
            v_scr[h] = v_full[:, sl].astype(v_scr.dtype)                 # (S, hd)

    # ---- Q projection for this query tile (lane-dense N = H matmul) ---------
    row0 = pl.multiple_of(qi * tile_q, tile_q)
    x_tile = x_ref[0, pl.ds(row0, tile_q), :]                            # (TQ, H) f32
    q_full = jnp.dot(x_tile.astype(jnp.bfloat16), wq_ref[...],
                     preferred_element_type=jnp.float32) + bq_ref[...]
    q_full = q_full.astype(jnp.bfloat16)                                 # pre-scaled

    # ---- Attention + output projection, accumulated over heads --------------
    # TODO(synk): dropout on attention probs / dense output skipped
    # (eval-mode identity); the reference module consumes no attention mask.
    acc = None                                                           # (TQ, H) f32
    for h in range(num_heads):
        sl = slice(h * head_dim, (h + 1) * head_dim)
        q_h = q_full[:, sl]                                              # (TQ, hd) bf16
        s = jnp.dot(q_h, kT_scr[h],
                    preferred_element_type=jnp.float32)                  # (TQ, S) f32
        m = jnp.max(s, axis=-1, keepdims=True)
        p = jnp.exp(s - m)
        denom = jnp.sum(p, axis=-1, keepdims=True)
        ctx = jnp.dot(p.astype(jnp.bfloat16), v_scr[h],
                      preferred_element_type=jnp.float32)                # (TQ, hd)
        # Normalise after PV: scales hd instead of S elements per row (EUP).
        ctx = ctx * pl.reciprocal(denom, approx=True)
        contrib = jnp.dot(ctx.astype(jnp.bfloat16), wo_ref[h],
                          preferred_element_type=jnp.float32)            # (TQ, H)
        acc = contrib if acc is None else acc + contrib

    # ---- Residual + LayerNorm (f32 statistics) -------------------------------
    y = acc + bo_ref[...] + x_tile
    mean = jnp.mean(y, axis=-1, keepdims=True)
    var = jnp.mean((y - mean) ** 2, axis=-1, keepdims=True)
    normed = (y - mean) * jax.lax.rsqrt(var + ln_eps)
    out_ref[0] = (normed * g_ref[...] + b_ref[...]).astype(out_ref.dtype)


def _choose_q_tile(seq_len, max_tile=512):
    """Largest query tile <= max_tile dividing seq_len, keeping the (8,128)
    tiling rule (tile % 8 == 0 or tile == seq_len). Falls back to full-S only
    when no such divisor exists."""
    if seq_len <= max_tile:
        return seq_len
    best = None
    for t in range(8, max_tile + 1, 8):
        if seq_len % t == 0:
            best = t
    return best if best is not None else seq_len


def _vmem_limit_bytes(working_set_bytes):
    """Generation-aware VMEM limit: 2x working set, >= default 32 MiB, capped
    at 75% of physical VMEM (leaves headroom for compiler scratch)."""
    try:
        cap = pltpu.get_tpu_info().vmem_capacity_bytes
    except Exception:  # pragma: no cover - fall back to smallest (v7x) VMEM
        cap = 64 * 1024 * 1024
    want = max(32 * 1024 * 1024, 2 * working_set_bytes)
    return int(min(want, 0.75 * cap))


_HAS_BUFFERED = hasattr(pl, "Buffered")


def _const_spec(*shape):
    """BlockSpec for a constant-index (never re-fetched) block; single-buffered
    when the API allows so it does not double its VMEM footprint."""
    idx = lambda b, qi: (0,) * len(shape)
    if _HAS_BUFFERED:
        return pl.BlockSpec(shape, idx, pipeline_mode=pl.Buffered(1))
    return pl.BlockSpec(shape, idx)


def pack_params(params, *, num_heads):
    """One-time parameter packing (call at parameter-load time, NOT per call):
    bf16 weight casts, 1/sqrt(hd) folded into Q weight/bias, dense weight
    reshaped into per-head (hd, H) slabs."""
    H = params["wq"].shape[0]
    assert H % num_heads == 0
    hd = H // num_heads
    scale = 1.0 / math.sqrt(hd)
    as_row = lambda v: jnp.asarray(v, jnp.float32).reshape(1, H)
    return {
        "wq": (params["wq"] * scale).astype(jnp.bfloat16),
        "bq": as_row(params["bq"] * scale),
        "wk": params["wk"].astype(jnp.bfloat16),
        "bk": as_row(params["bk"]),
        "wv": params["wv"].astype(jnp.bfloat16),
        "bv": as_row(params["bv"]),
        "wo": params["wo"].reshape(num_heads, hd, H).astype(jnp.bfloat16),
        "bo": as_row(params["bo"]),
        "gamma": as_row(params["gamma"]),
        "beta": as_row(params["beta"]),
    }


def multi_head_attention(hidden_states, packed, *, num_heads, ln_eps=1e-5,
                         max_q_tile=512):
    """hidden_states: (B, S, H) f32. packed: output of pack_params()."""
    B, S, H = hidden_states.shape
    assert H % num_heads == 0
    hd = H // num_heads
    tq = _choose_q_tile(S, max_q_tile)
    n_q = S // tq

    # Working-set estimate: x block (2 buffers), single-buffered weights,
    # out tile (2 buffers), K^T/V bf16 scratch, largest in-flight f32 temps.
    est = (2 * S * H * 4 + 4 * H * H * 2 + 6 * H * 4 + 2 * tq * H * 4
           + 2 * num_heads * hd * S * 2
           + (tq * S + 3 * tq * H + 2 * S * H) * 4)

    kernel = functools.partial(_mha_kernel, num_heads=num_heads, head_dim=hd,
                               tile_q=tq, ln_eps=ln_eps)

    # TODO(synk): for very long sequences where full-S K/V bf16 scratch no
    # longer fits VMEM, add a KV-tile grid axis with an online-softmax
    # accumulator (flash-style) instead of whole-S K^T/V scratch.
    return pl.pallas_call(
        kernel,
        out_shape=jax.ShapeDtypeStruct((B, S, H), jnp.float32),
        grid=(B, n_q),
        in_specs=[
            pl.BlockSpec((1, S, H), lambda b, qi: (b, 0, 0)),   # x (full sequence)
            _const_spec(H, H),                                  # wq (pre-scaled)
            _const_spec(1, H),                                  # bq (pre-scaled)
            _const_spec(H, H),                                  # wk
            _const_spec(1, H),                                  # bk
            _const_spec(H, H),                                  # wv
            _const_spec(1, H),                                  # bv
            _const_spec(num_heads, hd, H),                      # wo per head
            _const_spec(1, H),                                  # bo
            _const_spec(1, H),                                  # gamma
            _const_spec(1, H),                                  # beta
        ],
        out_specs=pl.BlockSpec((1, tq, H), lambda b, qi: (b, qi, 0)),
        scratch_shapes=[
            pltpu.VMEM((num_heads, hd, S), jnp.bfloat16),       # K^T per head
            pltpu.VMEM((num_heads, S, hd), jnp.bfloat16),       # V per head
        ],
        compiler_params=pltpu.CompilerParams(
            # batch outer & parallel (megacore shards batches, K/V computed
            # exactly once per batch per core); query tiles sequential so the
            # K/V scratch persists across them.
            dimension_semantics=("parallel", "arbitrary"),
            vmem_limit_bytes=_vmem_limit_bytes(est)),
    )(hidden_states, packed["wq"], packed["bq"], packed["wk"], packed["bk"],
      packed["wv"], packed["bv"], packed["wo"], packed["bo"],
      packed["gamma"], packed["beta"])


def _reference(hidden_states, params, *, num_heads, ln_eps=1e-5):
    """Pure-JAX f32 reference matching the PyTorch module (eval mode)."""
    B, S, H = hidden_states.shape
    hd = H // num_heads
    x = hidden_states
    q = x @ params["wq"] + params["bq"]
    k = x @ params["wk"] + params["bk"]
    v = x @ params["wv"] + params["bv"]
    split = lambda t: t.reshape(B, S, num_heads, hd).transpose(0, 2, 1, 3)
    qh, kh, vh = split(q), split(k), split(v)
    scores = jnp.einsum('bhqd,bhkd->bhqk', qh, kh) / math.sqrt(hd)
    probs = jax.nn.softmax(scores, axis=-1)
    ctx = jnp.einsum('bhqk,bhkd->bhqd', probs, vh)
    ctx = ctx.transpose(0, 2, 1, 3).reshape(B, S, H)
    t1 = ctx @ params["wo"] + params["bo"]
    y = t1 + x
    mean = y.mean(-1, keepdims=True)
    var = ((y - mean) ** 2).mean(-1, keepdims=True)
    return (y - mean) / jnp.sqrt(var + ln_eps) * params["gamma"] + params["beta"]


def init_params(key, hidden_size):
    """Deterministic synthetic parameters. Weights stored as [in, out]."""
    ks = jax.random.split(key, 8)
    std = 0.02
    H = hidden_size
    return {
        "wq": std * jax.random.normal(ks[0], (H, H), jnp.float32),
        "bq": std * jax.random.normal(ks[1], (1, H), jnp.float32),
        "wk": std * jax.random.normal(ks[2], (H, H), jnp.float32),
        "bk": std * jax.random.normal(ks[3], (1, H), jnp.float32),
        "wv": std * jax.random.normal(ks[4], (H, H), jnp.float32),
        "bv": std * jax.random.normal(ks[5], (1, H), jnp.float32),
        "wo": std * jax.random.normal(ks[6], (H, H), jnp.float32),
        "bo": std * jax.random.normal(ks[7], (1, H), jnp.float32),
        "gamma": jnp.ones((1, H), jnp.float32),
        "beta": jnp.zeros((1, H), jnp.float32),
    }


if __name__ == "__main__":
    B, S, H = 2, 8, 32
    NUM_HEADS = 4

    key = jax.random.PRNGKey(0)
    k_x, k_p = jax.random.split(key)
    hidden_states = jax.random.normal(k_x, (B, S, H), jnp.float32)
    params = init_params(k_p, H)

    # One-time packing (folded scale, bf16 casts, per-head dense slabs).
    packed = pack_params(params, num_heads=NUM_HEADS)

    out = multi_head_attention(hidden_states, packed, num_heads=NUM_HEADS)
    out = jax.block_until_ready(out)
    assert out.shape == (B, S, H)

    # Sanity check vs. pure-JAX f32 reference (kernel uses bf16 matmuls).
    ref = _reference(hidden_states, params, num_heads=NUM_HEADS)
    err = float(jnp.max(jnp.abs(out - ref)))
    assert err < 5e-2, f"max abs error too large: {err}"
    print("KERNEL_OK")
</pallas_src>

<mosaic_0001>
module attributes {stable_mosaic.version = 11 : i64} {
  func.func @_mha_kernel(%arg0: i32, %arg1: i32, %arg2: memref<1x8x32xf32, #tpu.memory_space<vmem>>, %arg3: memref<32x32xbf16, #tpu.memory_space<vmem>>, %arg4: memref<1x32xf32, #tpu.memory_space<vmem>>, %arg5: memref<32x32xbf16, #tpu.memory_space<vmem>>, %arg6: memref<1x32xf32, #tpu.memory_space<vmem>>, %arg7: memref<32x32xbf16, #tpu.memory_space<vmem>>, %arg8: memref<1x32xf32, #tpu.memory_space<vmem>>, %arg9: memref<4x8x32xbf16, #tpu.memory_space<vmem>>, %arg10: memref<1x32xf32, #tpu.memory_space<vmem>>, %arg11: memref<1x32xf32, #tpu.memory_space<vmem>>, %arg12: memref<1x32xf32, #tpu.memory_space<vmem>>, %arg13: memref<1x8x32xf32, #tpu.memory_space<vmem>>, %arg14: memref<4x8x8xbf16, #tpu.memory_space<vmem>>, %arg15: memref<4x8x8xbf16, #tpu.memory_space<vmem>>) attributes {dimension_semantics = [#tpu.dimension_semantics<parallel>, #tpu.dimension_semantics<arbitrary>], iteration_bounds = array<i64: 2, 1>, scalar_prefetch = 0 : i64, scratch_operands = 2 : i64, tpu.core_type = #tpu.core_type<tc>, window_params = [{transform_indices = @transform_0, window_bounds = array<i64: 1, 8, 32>}, {pipeline_mode = #tpu.pipeline_mode<synchronous>, transform_indices = @transform_1, window_bounds = array<i64: 32, 32>}, {pipeline_mode = #tpu.pipeline_mode<synchronous>, transform_indices = @transform_2, window_bounds = array<i64: 1, 32>}, {pipeline_mode = #tpu.pipeline_mode<synchronous>, transform_indices = @transform_3, window_bounds = array<i64: 32, 32>}, {pipeline_mode = #tpu.pipeline_mode<synchronous>, transform_indices = @transform_4, window_bounds = array<i64: 1, 32>}, {pipeline_mode = #tpu.pipeline_mode<synchronous>, transform_indices = @transform_5, window_bounds = array<i64: 32, 32>}, {pipeline_mode = #tpu.pipeline_mode<synchronous>, transform_indices = @transform_6, window_bounds = array<i64: 1, 32>}, {pipeline_mode = #tpu.pipeline_mode<synchronous>, transform_indices = @transform_7, window_bounds = array<i64: 4, 8, 32>}, {pipeline_mode = #tpu.pipeline_mode<synchronous>, transform_indices = @transform_8, window_bounds = array<i64: 1, 32>}, {pipeline_mode = #tpu.pipeline_mode<synchronous>, transform_indices = @transform_9, window_bounds = array<i64: 1, 32>}, {pipeline_mode = #tpu.pipeline_mode<synchronous>, transform_indices = @transform_10, window_bounds = array<i64: 1, 32>}, {transform_indices = @transform_11, window_bounds = array<i64: 1, 8, 32>}]} {
    %c0_i32 = arith.constant 0 : i32
    %0 = arith.cmpi eq, %arg1, %c0_i32 : i32
    %1 = arith.extui %0 : i1 to i32
    %c0_i32_0 = arith.constant 0 : i32
    %2 = arith.cmpi ne, %1, %c0_i32_0 : i32
    scf.if %2 {
      %c0_73 = arith.constant 0 : index
      %c0_74 = arith.constant 0 : index
      %c0_75 = arith.constant 0 : index
      %137 = vector.load %arg2[%c0_73, %c0_74, %c0_75] : memref<1x8x32xf32, #tpu.memory_space<vmem>>, vector<1x8x32xf32>
      %138 = vector.shape_cast %137 : vector<1x8x32xf32> to vector<8x32xf32>
      %139 = arith.truncf %138 : vector<8x32xf32> to vector<8x32xbf16>
      %c0_76 = arith.constant 0 : index
      %c0_77 = arith.constant 0 : index
      %140 = vector.load %arg5[%c0_76, %c0_77] : memref<32x32xbf16, #tpu.memory_space<vmem>>, vector<32x32xbf16>
      %cst_78 = arith.constant dense<0.000000e+00> : vector<8x32xf32>
      %141 = tpu.matmul %139, %140, %cst_78 {dimension_numbers = #tpu.dot_dimension_numbers<[1], [0], [0], [1], [0, 0, 1, 1], [], []>} : vector<8x32xbf16>, vector<32x32xbf16>, vector<8x32xf32> -> vector<8x32xf32>
      %c0_79 = arith.constant 0 : index
      %c0_80 = arith.constant 0 : index
      %142 = vector.load %arg6[%c0_79, %c0_80] : memref<1x32xf32, #tpu.memory_space<vmem>>, vector<1x32xf32>
      %143 = vector.broadcast %142 : vector<1x32xf32> to vector<8x32xf32>
      %144 = arith.addf %141, %143 : vector<8x32xf32>
      %c0_81 = arith.constant 0 : index
      %c0_82 = arith.constant 0 : index
      %145 = vector.load %arg7[%c0_81, %c0_82] : memref<32x32xbf16, #tpu.memory_space<vmem>>, vector<32x32xbf16>
      %cst_83 = arith.constant dense<0.000000e+00> : vector<8x32xf32>
      %146 = tpu.matmul %139, %145, %cst_83 {dimension_numbers = #tpu.dot_dimension_numbers<[1], [0], [0], [1], [0, 0, 1, 1], [], []>} : vector<8x32xbf16>, vector<32x32xbf16>, vector<8x32xf32> -> vector<8x32xf32>
      %c0_84 = arith.constant 0 : index
      %c0_85 = arith.constant 0 : index
      %147 = vector.load %arg8[%c0_84, %c0_85] : memref<1x32xf32, #tpu.memory_space<vmem>>, vector<1x32xf32>
      %148 = vector.broadcast %147 : vector<1x32xf32> to vector<8x32xf32>
      %149 = arith.addf %146, %148 : vector<8x32xf32>
      %150 = vector.extract_strided_slice %144 {offsets = [0, 0], sizes = [8, 8], strides = [1, 1]} : vector<8x32xf32> to vector<8x8xf32>
      %151 = tpu.transpose %150, [1, 0] : vector<8x8xf32> -> vector<8x8xf32>
      %152 = arith.truncf %151 : vector<8x8xf32> to vector<8x8xbf16>
      %c0_86 = arith.constant 0 : index
      %c0_87 = arith.constant 0 : index
      %c0_88 = arith.constant 0 : index
      %153 = vector.load %arg14[%c0_86, %c0_87, %c0_88] : memref<4x8x8xbf16, #tpu.memory_space<vmem>>, vector<1x8x8xbf16>
      %154 = vector.shape_cast %153 : vector<1x8x8xbf16> to vector<8x8xbf16>
      %155 = vector.shape_cast %152 : vector<8x8xbf16> to vector<1x8x8xbf16>
      tpu.vector_store %arg14[%c0_86, %c0_87, %c0_88], %155 {strides = array<i32>} : memref<4x8x8xbf16, #tpu.memory_space<vmem>>, vector<1x8x8xbf16>,
      %156 = vector.extract_strided_slice %149 {offsets = [0, 0], sizes = [8, 8], strides = [1, 1]} : vector<8x32xf32> to vector<8x8xf32>
      %157 = arith.truncf %156 : vector<8x8xf32> to vector<8x8xbf16>
      %c0_89 = arith.constant 0 : index
      %c0_90 = arith.constant 0 : index
      %c0_91 = arith.constant 0 : index
      %158 = vector.load %arg15[%c0_89, %c0_90, %c0_91] : memref<4x8x8xbf16, #tpu.memory_space<vmem>>, vector<1x8x8xbf16>
      %159 = vector.shape_cast %158 : vector<1x8x8xbf16> to vector<8x8xbf16>
      %160 = vector.shape_cast %157 : vector<8x8xbf16> to vector<1x8x8xbf16>
      tpu.vector_store %arg15[%c0_89, %c0_90, %c0_91], %160 {strides = array<i32>} : memref<4x8x8xbf16, #tpu.memory_space<vmem>>, vector<1x8x8xbf16>,
      %161 = vector.extract_strided_slice %144 {offsets = [0, 8], sizes = [8, 8], strides = [1, 1]} : vector<8x32xf32> to vector<8x8xf32>
      %162 = tpu.transpose %161, [1, 0] : vector<8x8xf32> -> vector<8x8xf32>
      %163 = arith.truncf %162 : vector<8x8xf32> to vector<8x8xbf16>
      %c1_92 = arith.constant 1 : index
      %c0_93 = arith.constant 0 : index
      %c0_94 = arith.constant 0 : index
      %164 = vector.load %arg14[%c1_92, %c0_93, %c0_94] : memref<4x8x8xbf16, #tpu.memory_space<vmem>>, vector<1x8x8xbf16>
      %165 = vector.shape_cast %164 : vector<1x8x8xbf16> to vector<8x8xbf16>
      %166 = vector.shape_cast %163 : vector<8x8xbf16> to vector<1x8x8xbf16>
      tpu.vector_store %arg14[%c1_92, %c0_93, %c0_94], %166 {strides = array<i32>} : memref<4x8x8xbf16, #tpu.memory_space<vmem>>, vector<1x8x8xbf16>,
      %167 = vector.extract_strided_slice %149 {offsets = [0, 8], sizes = [8, 8], strides = [1, 1]} : vector<8x32xf32> to vector<8x8xf32>
      %168 = arith.truncf %167 : vector<8x8xf32> to vector<8x8xbf16>
      %c1_95 = arith.constant 1 : index
      %c0_96 = arith.constant 0 : index
      %c0_97 = arith.constant 0 : index
      %169 = vector.load %arg15[%c1_95, %c0_96, %c0_97] : memref<4x8x8xbf16, #tpu.memory_space<vmem>>, vector<1x8x8xbf16>
      %170 = vector.shape_cast %169 : vector<1x8x8xbf16> to vector<8x8xbf16>
      %171 = vector.shape_cast %168 : vector<8x8xbf16> to vector<1x8x8xbf16>
      tpu.vector_store %arg15[%c1_95, %c0_96, %c0_97], %171 {strides = array<i32>} : memref<4x8x8xbf16, #tpu.memory_space<vmem>>, vector<1x8x8xbf16>,
      %172 = vector.extract_strided_slice %144 {offsets = [0, 16], sizes = [8, 8], strides = [1, 1]} : vector<8x32xf32> to vector<8x8xf32>
      %173 = tpu.transpose %172, [1, 0] : vector<8x8xf32> -> vector<8x8xf32>
      %174 = arith.truncf %173 : vector<8x8xf32> to vector<8x8xbf16>
      %c2_98 = arith.constant 2 : index
      %c0_99 = arith.constant 0 : index
      %c0_100 = arith.constant 0 : index
      %175 = vector.load %arg14[%c2_98, %c0_99, %c0_100] : memref<4x8x8xbf16, #tpu.memory_space<vmem>>, vector<1x8x8xbf16>
      %176 = vector.shape_cast %175 : vector<1x8x8xbf16> to vector<8x8xbf16>
      %177 = vector.shape_cast %174 : vector<8x8xbf16> to vector<1x8x8xbf16>
      tpu.vector_store %arg14[%c2_98, %c0_99, %c0_100], %177 {strides = array<i32>} : memref<4x8x8xbf16, #tpu.memory_space<vmem>>, vector<1x8x8xbf16>,
      %178 = vector.extract_strided_slice %149 {offsets = [0, 16], sizes = [8, 8], strides = [1, 1]} : vector<8x32xf32> to vector<8x8xf32>
      %179 = arith.truncf %178 : vector<8x8xf32> to vector<8x8xbf16>
      %c2_101 = arith.constant 2 : index
      %c0_102 = arith.constant 0 : index
      %c0_103 = arith.constant 0 : index
      %180 = vector.load %arg15[%c2_101, %c0_102, %c0_103] : memref<4x8x8xbf16, #tpu.memory_space<vmem>>, vector<1x8x8xbf16>
      %181 = vector.shape_cast %180 : vector<1x8x8xbf16> to vector<8x8xbf16>
      %182 = vector.shape_cast %179 : vector<8x8xbf16> to vector<1x8x8xbf16>
      tpu.vector_store %arg15[%c2_101, %c0_102, %c0_103], %182 {strides = array<i32>} : memref<4x8x8xbf16, #tpu.memory_space<vmem>>, vector<1x8x8xbf16>,
      %183 = vector.extract_strided_slice %144 {offsets = [0, 24], sizes = [8, 8], strides = [1, 1]} : vector<8x32xf32> to vector<8x8xf32>
      %184 = tpu.transpose %183, [1, 0] : vector<8x8xf32> -> vector<8x8xf32>
      %185 = arith.truncf %184 : vector<8x8xf32> to vector<8x8xbf16>
      %c3_104 = arith.constant 3 : index
      %c0_105 = arith.constant 0 : index
      %c0_106 = arith.constant 0 : index
      %186 = vector.load %arg14[%c3_104, %c0_105, %c0_106] : memref<4x8x8xbf16, #tpu.memory_space<vmem>>, vector<1x8x8xbf16>
      %187 = vector.shape_cast %186 : vector<1x8x8xbf16> to vector<8x8xbf16>
      %188 = vector.shape_cast %185 : vector<8x8xbf16> to vector<1x8x8xbf16>
      tpu.vector_store %arg14[%c3_104, %c0_105, %c0_106], %188 {strides = array<i32>} : memref<4x8x8xbf16, #tpu.memory_space<vmem>>, vector<1x8x8xbf16>,
      %189 = vector.extract_strided_slice %149 {offsets = [0, 24], sizes = [8, 8], strides = [1, 1]} : vector<8x32xf32> to vector<8x8xf32>
      %190 = arith.truncf %189 : vector<8x8xf32> to vector<8x8xbf16>
      %c3_107 = arith.constant 3 : index
      %c0_108 = arith.constant 0 : index
      %c0_109 = arith.constant 0 : index
      %191 = vector.load %arg15[%c3_107, %c0_108, %c0_109] : memref<4x8x8xbf16, #tpu.memory_space<vmem>>, vector<1x8x8xbf16>
      %192 = vector.shape_cast %191 : vector<1x8x8xbf16> to vector<8x8xbf16>
      %193 = vector.shape_cast %190 : vector<8x8xbf16> to vector<1x8x8xbf16>
      tpu.vector_store %arg15[%c3_107, %c0_108, %c0_109], %193 {strides = array<i32>} : memref<4x8x8xbf16, #tpu.memory_space<vmem>>, vector<1x8x8xbf16>,
    } else {
    }
    %c8_i32 = arith.constant 8 : i32
    %3 = arith.muli %arg1, %c8_i32 : i32
    %4 = tpu.assume_multiple %3, 8 : i32
    %c0 = arith.constant 0 : index
    %5 = arith.index_cast %4 : i32 to index
    %c0_1 = arith.constant 0 : index
    %6 = vector.load %arg2[%c0, %5, %c0_1] : memref<1x8x32xf32, #tpu.memory_space<vmem>>, vector<1x8x32xf32>
    %7 = vector.shape_cast %6 : vector<1x8x32xf32> to vector<8x32xf32>
    %8 = arith.truncf %7 : vector<8x32xf32> to vector<8x32xbf16>
    %c0_2 = arith.constant 0 : index
    %c0_3 = arith.constant 0 : index
    %9 = vector.load %arg3[%c0_2, %c0_3] : memref<32x32xbf16, #tpu.memory_space<vmem>>, vector<32x32xbf16>
    %cst = arith.constant dense<0.000000e+00> : vector<8x32xf32>
    %10 = tpu.matmul %8, %9, %cst {dimension_numbers = #tpu.dot_dimension_numbers<[1], [0], [0], [1], [0, 0, 1, 1], [], []>} : vector<8x32xbf16>, vector<32x32xbf16>, vector<8x32xf32> -> vector<8x32xf32>
    %c0_4 = arith.constant 0 : index
    %c0_5 = arith.constant 0 : index
    %11 = vector.load %arg4[%c0_4, %c0_5] : memref<1x32xf32, #tpu.memory_space<vmem>>, vector<1x32xf32>
    %12 = vector.broadcast %11 : vector<1x32xf32> to vector<8x32xf32>
    %13 = arith.addf %10, %12 : vector<8x32xf32>
    %14 = arith.truncf %13 : vector<8x32xf32> to vector<8x32xbf16>
    %15 = vector.extract_strided_slice %14 {offsets = [0, 0], sizes = [8, 8], strides = [1, 1]} : vector<8x32xbf16> to vector<8x8xbf16>
    %c0_6 = arith.constant 0 : index
    %c0_7 = arith.constant 0 : index
    %c0_8 = arith.constant 0 : index
    %16 = vector.load %arg14[%c0_6, %c0_7, %c0_8] : memref<4x8x8xbf16, #tpu.memory_space<vmem>>, vector<1x8x8xbf16>
    %17 = vector.shape_cast %16 : vector<1x8x8xbf16> to vector<8x8xbf16>
    %cst_9 = arith.constant dense<0.000000e+00> : vector<8x8xf32>
    %18 = tpu.matmul %15, %17, %cst_9 {dimension_numbers = #tpu.dot_dimension_numbers<[1], [0], [0], [1], [0, 0, 1, 1], [], []>} : vector<8x8xbf16>, vector<8x8xbf16>, vector<8x8xf32> -> vector<8x8xf32>
    %cst_10 = arith.constant dense<0xFF800000> : vector<8xf32>
    %19 = vector.multi_reduction <maximumf>, %18, %cst_10 [1] : vector<8x8xf32> to vector<8xf32>
    %20 = vector.shape_cast %19 : vector<8xf32> to vector<8x1xf32>
    %21 = vector.broadcast %20 : vector<8x1xf32> to vector<8x8xf32>
    %22 = arith.subf %18, %21 : vector<8x8xf32>
    %23 = math.exp %22 : vector<8x8xf32>
    %cst_11 = arith.constant dense<0.000000e+00> : vector<8xf32>
    %24 = vector.multi_reduction <add>, %23, %cst_11 [1] : vector<8x8xf32> to vector<8xf32>
    %25 = vector.shape_cast %24 : vector<8xf32> to vector<8x1xf32>
    %26 = arith.truncf %23 : vector<8x8xf32> to vector<8x8xbf16>
    %c0_12 = arith.constant 0 : index
    %c0_13 = arith.constant 0 : index
    %c0_14 = arith.constant 0 : index
    %27 = vector.load %arg15[%c0_12, %c0_13, %c0_14] : memref<4x8x8xbf16, #tpu.memory_space<vmem>>, vector<1x8x8xbf16>
    %28 = vector.shape_cast %27 : vector<1x8x8xbf16> to vector<8x8xbf16>
    %cst_15 = arith.constant dense<0.000000e+00> : vector<8x8xf32>
    %29 = tpu.matmul %26, %28, %cst_15 {dimension_numbers = #tpu.dot_dimension_numbers<[1], [0], [0], [1], [0, 0, 1, 1], [], []>} : vector<8x8xbf16>, vector<8x8xbf16>, vector<8x8xf32> -> vector<8x8xf32>
    %30 = tpu.reciprocal %25 {approx = true} : vector<8x1xf32> -> vector<8x1xf32>
    %31 = vector.broadcast %30 : vector<8x1xf32> to vector<8x8xf32>
    %32 = arith.mulf %29, %31 : vector<8x8xf32>
    %33 = arith.truncf %32 : vector<8x8xf32> to vector<8x8xbf16>
    %c0_16 = arith.constant 0 : index
    %c0_17 = arith.constant 0 : index
    %c0_18 = arith.constant 0 : index
    %34 = vector.load %arg9[%c0_16, %c0_17, %c0_18] : memref<4x8x32xbf16, #tpu.memory_space<vmem>>, vector<1x8x32xbf16>
    %35 = vector.shape_cast %34 : vector<1x8x32xbf16> to vector<8x32xbf16>
    %cst_19 = arith.constant dense<0.000000e+00> : vector<8x32xf32>
    %36 = tpu.matmul %33, %35, %cst_19 {dimension_numbers = #tpu.dot_dimension_numbers<[1], [0], [0], [1], [0, 0, 1, 1], [], []>} : vector<8x8xbf16>, vector<8x32xbf16>, vector<8x32xf32> -> vector<8x32xf32>
    %37 = vector.extract_strided_slice %14 {offsets = [0, 8], sizes = [8, 8], strides = [1, 1]} : vector<8x32xbf16> to vector<8x8xbf16>
    %c1 = arith.constant 1 : index
    %c0_20 = arith.constant 0 : index
    %c0_21 = arith.constant 0 : index
    %38 = vector.load %arg14[%c1, %c0_20, %c0_21] : memref<4x8x8xbf16, #tpu.memory_space<vmem>>, vector<1x8x8xbf16>
    %39 = vector.shape_cast %38 : vector<1x8x8xbf16> to vector<8x8xbf16>
    %cst_22 = arith.constant dense<0.000000e+00> : vector<8x8xf32>
    %40 = tpu.matmul %37, %39, %cst_22 {dimension_numbers = #tpu.dot_dimension_numbers<[1], [0], [0], [1], [0, 0, 1, 1], [], []>} : vector<8x8xbf16>, vector<8x8xbf16>, vector<8x8xf32> -> vector<8x8xf32>
    %cst_23 = arith.constant dense<0xFF800000> : vector<8xf32>
    %41 = vector.multi_reduction <maximumf>, %40, %cst_23 [1] : vector<8x8xf32> to vector<8xf32>
    %42 = vector.shape_cast %41 : vector<8xf32> to vector<8x1xf32>
    %43 = vector.broadcast %42 : vector<8x1xf32> to vector<8x8xf32>
    %44 = arith.subf %40, %43 : vector<8x8xf32>
    %45 = math.exp %44 : vector<8x8xf32>
    %cst_24 = arith.constant dense<0.000000e+00> : vector<8xf32>
    %46 = vector.multi_reduction <add>, %45, %cst_24 [1] : vector<8x8xf32> to vector<8xf32>
    %47 = vector.shape_cast %46 : vector<8xf32> to vector<8x1xf32>
    %48 = arith.truncf %45 : vector<8x8xf32> to vector<8x8xbf16>
    %c1_25 = arith.constant 1 : index
    %c0_26 = arith.constant 0 : index
    %c0_27 = arith.constant 0 : index
    %49 = vector.load %arg15[%c1_25, %c0_26, %c0_27] : memref<4x8x8xbf16, #tpu.memory_space<vmem>>, vector<1x8x8xbf16>
    %50 = vector.shape_cast %49 : vector<1x8x8xbf16> to vector<8x8xbf16>
    %cst_28 = arith.constant dense<0.000000e+00> : vector<8x8xf32>
    %51 = tpu.matmul %48, %50, %cst_28 {dimension_numbers = #tpu.dot_dimension_numbers<[1], [0], [0], [1], [0, 0, 1, 1], [], []>} : vector<8x8xbf16>, vector<8x8xbf16>, vector<8x8xf32> -> vector<8x8xf32>
    %52 = tpu.reciprocal %47 {approx = true} : vector<8x1xf32> -> vector<8x1xf32>
    %53 = vector.broadcast %52 : vector<8x1xf32> to vector<8x8xf32>
    %54 = arith.mulf %51, %53 : vector<8x8xf32>
    %55 = arith.truncf %54 : vector<8x8xf32> to vector<8x8xbf16>
    %c1_29 = arith.constant 1 : index
    %c0_30 = arith.constant 0 : index
    %c0_31 = arith.constant 0 : index
    %56 = vector.load %arg9[%c1_29, %c0_30, %c0_31] : memref<4x8x32xbf16, #tpu.memory_space<vmem>>, vector<1x8x32xbf16>
    %57 = vector.shape_cast %56 : vector<1x8x32xbf16> to vector<8x32xbf16>
    %cst_32 = arith.constant dense<0.000000e+00> : vector<8x32xf32>
    %58 = tpu.matmul %55, %57, %cst_32 {dimension_numbers = #tpu.dot_dimension_numbers<[1], [0], [0], [1], [0, 0, 1, 1], [], []>} : vector<8x8xbf16>, vector<8x32xbf16>, vector<8x32xf32> -> vector<8x32xf32>
    %59 = arith.addf %36, %58 : vector<8x32xf32>
    %60 = vector.extract_strided_slice %14 {offsets = [0, 16], sizes = [8, 8], strides = [1, 1]} : vector<8x32xbf16> to vector<8x8xbf16>
    %c2 = arith.constant 2 : index
    %c0_33 = arith.constant 0 : index
    %c0_34 = arith.constant 0 : index
    %61 = vector.load %arg14[%c2, %c0_33, %c0_34] : memref<4x8x8xbf16, #tpu.memory_space<vmem>>, vector<1x8x8xbf16>
    %62 = vector.shape_cast %61 : vector<1x8x8xbf16> to vector<8x8xbf16>
    %cst_35 = arith.constant dense<0.000000e+00> : vector<8x8xf32>
    %63 = tpu.matmul %60, %62, %cst_35 {dimension_numbers = #tpu.dot_dimension_numbers<[1], [0], [0], [1], [0, 0, 1, 1], [], []>} : vector<8x8xbf16>, vector<8x8xbf16>, vector<8x8xf32> -> vector<8x8xf32>
    %cst_36 = arith.constant dense<0xFF800000> : vector<8xf32>
    %64 = vector.multi_reduction <maximumf>, %63, %cst_36 [1] : vector<8x8xf32> to vector<8xf32>
    %65 = vector.shape_cast %64 : vector<8xf32> to vector<8x1xf32>
    %66 = vector.broadcast %65 : vector<8x1xf32> to vector<8x8xf32>
    %67 = arith.subf %63, %66 : vector<8x8xf32>
    %68 = math.exp %67 : vector<8x8xf32>
    %cst_37 = arith.constant dense<0.000000e+00> : vector<8xf32>
    %69 = vector.multi_reduction <add>, %68, %cst_37 [1] : vector<8x8xf32> to vector<8xf32>
    %70 = vector.shape_cast %69 : vector<8xf32> to vector<8x1xf32>
    %71 = arith.truncf %68 : vector<8x8xf32> to vector<8x8xbf16>
    %c2_38 = arith.constant 2 : index
    %c0_39 = arith.constant 0 : index
    %c0_40 = arith.constant 0 : index
    %72 = vector.load %arg15[%c2_38, %c0_39, %c0_40] : memref<4x8x8xbf16, #tpu.memory_space<vmem>>, vector<1x8x8xbf16>
    %73 = vector.shape_cast %72 : vector<1x8x8xbf16> to vector<8x8xbf16>
    %cst_41 = arith.constant dense<0.000000e+00> : vector<8x8xf32>
    %74 = tpu.matmul %71, %73, %cst_41 {dimension_numbers = #tpu.dot_dimension_numbers<[1], [0], [0], [1], [0, 0, 1, 1], [], []>} : vector<8x8xbf16>, vector<8x8xbf16>, vector<8x8xf32> -> vector<8x8xf32>
    %75 = tpu.reciprocal %70 {approx = true} : vector<8x1xf32> -> vector<8x1xf32>
    %76 = vector.broadcast %75 : vector<8x1xf32> to vector<8x8xf32>
    %77 = arith.mulf %74, %76 : vector<8x8xf32>
    %78 = arith.truncf %77 : vector<8x8xf32> to vector<8x8xbf16>
    %c2_42 = arith.constant 2 : index
    %c0_43 = arith.constant 0 : index
    %c0_44 = arith.constant 0 : index
    %79 = vector.load %arg9[%c2_42, %c0_43, %c0_44] : memref<4x8x32xbf16, #tpu.memory_space<vmem>>, vector<1x8x32xbf16>
    %80 = vector.shape_cast %79 : vector<1x8x32xbf16> to vector<8x32xbf16>
    %cst_45 = arith.constant dense<0.000000e+00> : vector<8x32xf32>
    %81 = tpu.matmul %78, %80, %cst_45 {dimension_numbers = #tpu.dot_dimension_numbers<[1], [0], [0], [1], [0, 0, 1, 1], [], []>} : vector<8x8xbf16>, vector<8x32xbf16>, vector<8x32xf32> -> vector<8x32xf32>
    %82 = arith.addf %59, %81 : vector<8x32xf32>
    %83 = vector.extract_strided_slice %14 {offsets = [0, 24], sizes = [8, 8], strides = [1, 1]} : vector<8x32xbf16> to vector<8x8xbf16>
    %c3 = arith.constant 3 : index
    %c0_46 = arith.constant 0 : index
    %c0_47 = arith.constant 0 : index
    %84 = vector.load %arg14[%c3, %c0_46, %c0_47] : memref<4x8x8xbf16, #tpu.memory_space<vmem>>, vector<1x8x8xbf16>
    %85 = vector.shape_cast %84 : vector<1x8x8xbf16> to vector<8x8xbf16>
    %cst_48 = arith.constant dense<0.000000e+00> : vector<8x8xf32>
    %86 = tpu.matmul %83, %85, %cst_48 {dimension_numbers = #tpu.dot_dimension_numbers<[1], [0], [0], [1], [0, 0, 1, 1], [], []>} : vector<8x8xbf16>, vector<8x8xbf16>, vector<8x8xf32> -> vector<8x8xf32>
    %cst_49 = arith.constant dense<0xFF800000> : vector<8xf32>
    %87 = vector.multi_reduction <maximumf>, %86, %cst_49 [1] : vector<8x8xf32> to vector<8xf32>
    %88 = vector.shape_cast %87 : vector<8xf32> to vector<8x1xf32>
    %89 = vector.broadcast %88 : vector<8x1xf32> to vector<8x8xf32>
    %90 = arith.subf %86, %89 : vector<8x8xf32>
    %91 = math.exp %90 : vector<8x8xf32>
    %cst_50 = arith.constant dense<0.000000e+00> : vector<8xf32>
    %92 = vector.multi_reduction <add>, %91, %cst_50 [1] : vector<8x8xf32> to vector<8xf32>
    %93 = vector.shape_cast %92 : vector<8xf32> to vector<8x1xf32>
    %94 = arith.truncf %91 : vector<8x8xf32> to vector<8x8xbf16>
    %c3_51 = arith.constant 3 : index
    %c0_52 = arith.constant 0 : index
    %c0_53 = arith.constant 0 : index
    %95 = vector.load %arg15[%c3_51, %c0_52, %c0_53] : memref<4x8x8xbf16, #tpu.memory_space<vmem>>, vector<1x8x8xbf16>
    %96 = vector.shape_cast %95 : vector<1x8x8xbf16> to vector<8x8xbf16>
    %cst_54 = arith.constant dense<0.000000e+00> : vector<8x8xf32>
    %97 = tpu.matmul %94, %96, %cst_54 {dimension_numbers = #tpu.dot_dimension_numbers<[1], [0], [0], [1], [0, 0, 1, 1], [], []>} : vector<8x8xbf16>, vector<8x8xbf16>, vector<8x8xf32> -> vector<8x8xf32>
    %98 = tpu.reciprocal %93 {approx = true} : vector<8x1xf32> -> vector<8x1xf32>
    %99 = vector.broadcast %98 : vector<8x1xf32> to vector<8x8xf32>
    %100 = arith.mulf %97, %99 : vector<8x8xf32>
    %101 = arith.truncf %100 : vector<8x8xf32> to vector<8x8xbf16>
    %c3_55 = arith.constant 3 : index
    %c0_56 = arith.constant 0 : index
    %c0_57 = arith.constant 0 : index
    %102 = vector.load %arg9[%c3_55, %c0_56, %c0_57] : memref<4x8x32xbf16, #tpu.memory_space<vmem>>, vector<1x8x32xbf16>
    %103 = vector.shape_cast %102 : vector<1x8x32xbf16> to vector<8x32xbf16>
    %cst_58 = arith.constant dense<0.000000e+00> : vector<8x32xf32>
    %104 = tpu.matmul %101, %103, %cst_58 {dimension_numbers = #tpu.dot_dimension_numbers<[1], [0], [0], [1], [0, 0, 1, 1], [], []>} : vector<8x8xbf16>, vector<8x32xbf16>, vector<8x32xf32> -> vector<8x32xf32>
    %105 = arith.addf %82, %104 : vector<8x32xf32>
    %c0_59 = arith.constant 0 : index
    %c0_60 = arith.constant 0 : index
    %106 = vector.load %arg10[%c0_59, %c0_60] : memref<1x32xf32, #tpu.memory_space<vmem>>, vector<1x32xf32>
    %107 = vector.broadcast %106 : vector<1x32xf32> to vector<8x32xf32>
    %108 = arith.addf %105, %107 : vector<8x32xf32>
    %109 = arith.addf %108, %7 : vector<8x32xf32>
    %cst_61 = arith.constant dense<0.000000e+00> : vector<8xf32>
    %110 = vector.multi_reduction <add>, %109, %cst_61 [1] : vector<8x32xf32> to vector<8xf32>
    %111 = vector.shape_cast %110 : vector<8xf32> to vector<8x1xf32>
    %cst_62 = arith.constant 3.200000e+01 : f32
    %112 = vector.broadcast %cst_62 : f32 to vector<8x1xf32>
    %113 = arith.divf %111, %112 : vector<8x1xf32>
    %114 = vector.broadcast %113 : vector<8x1xf32> to vector<8x32xf32>
    %115 = arith.subf %109, %114 : vector<8x32xf32>
    %116 = arith.mulf %115, %115 : vector<8x32xf32>
    %cst_63 = arith.constant dense<0.000000e+00> : vector<8xf32>
    %117 = vector.multi_reduction <add>, %116, %cst_63 [1] : vector<8x32xf32> to vector<8xf32>
    %118 = vector.shape_cast %117 : vector<8xf32> to vector<8x1xf32>
    %cst_64 = arith.constant 3.200000e+01 : f32
    %119 = vector.broadcast %cst_64 : f32 to vector<8x1xf32>
    %120 = arith.divf %118, %119 : vector<8x1xf32>
    %121 = vector.broadcast %113 : vector<8x1xf32> to vector<8x32xf32>
    %122 = arith.subf %109, %121 : vector<8x32xf32>
    %cst_65 = arith.constant 9.99999974E-6 : f32
    %123 = vector.broadcast %cst_65 : f32 to vector<8x1xf32>
    %124 = arith.addf %120, %123 : vector<8x1xf32>
    %125 = math.rsqrt %124 : vector<8x1xf32>
    %126 = vector.broadcast %125 : vector<8x1xf32> to vector<8x32xf32>
    %127 = arith.mulf %122, %126 : vector<8x32xf32>
    %c0_66 = arith.constant 0 : index
    %c0_67 = arith.constant 0 : index
    %128 = vector.load %arg11[%c0_66, %c0_67] : memref<1x32xf32, #tpu.memory_space<vmem>>, vector<1x32xf32>
    %129 = vector.broadcast %128 : vector<1x32xf32> to vector<8x32xf32>
    %130 = arith.mulf %127, %129 : vector<8x32xf32>
    %c0_68 = arith.constant 0 : index
    %c0_69 = arith.constant 0 : index
    %131 = vector.load %arg12[%c0_68, %c0_69] : memref<1x32xf32, #tpu.memory_space<vmem>>, vector<1x32xf32>
    %132 = vector.broadcast %131 : vector<1x32xf32> to vector<8x32xf32>
    %133 = arith.addf %130, %132 : vector<8x32xf32>
    %c0_70 = arith.constant 0 : index
    %c0_71 = arith.constant 0 : index
    %c0_72 = arith.constant 0 : index
    %134 = vector.load %arg13[%c0_70, %c0_71, %c0_72] : memref<1x8x32xf32, #tpu.memory_space<vmem>>, vector<1x8x32xf32>
    %135 = vector.shape_cast %134 : vector<1x8x32xf32> to vector<8x32xf32>
    %136 = vector.shape_cast %133 : vector<8x32xf32> to vector<1x8x32xf32>
    tpu.vector_store %arg13[%c0_70, %c0_71, %c0_72], %136 {strides = array<i32>} : memref<1x8x32xf32, #tpu.memory_space<vmem>>, vector<1x8x32xf32>,
    return
  }
  func.func @transform_0(%arg0: i32, %arg1: i32) -> (i32, i32, i32) {
    %c0_i32 = arith.constant 0 : i32
    %c0_i32_0 = arith.constant 0 : i32
    %c0_i32_1 = arith.constant 0 : i32
    return %arg0, %c0_i32, %c0_i32_0 : i32, i32, i32
  }
  func.func @transform_1(%arg0: i32, %arg1: i32) -> (i32, i32) {
    %c0_i32 = arith.constant 0 : i32
    %c0_i32_0 = arith.constant 0 : i32
    %c0_i32_1 = arith.constant 0 : i32
    return %c0_i32, %c0_i32_0 : i32, i32
  }
  func.func @transform_2(%arg0: i32, %arg1: i32) -> (i32, i32) {
    %c0_i32 = arith.constant 0 : i32
    %c0_i32_0 = arith.constant 0 : i32
    %c0_i32_1 = arith.constant 0 : i32
    return %c0_i32, %c0_i32_0 : i32, i32
  }
  func.func @transform_3(%arg0: i32, %arg1: i32) -> (i32, i32) {
    %c0_i32 = arith.constant 0 : i32
    %c0_i32_0 = arith.constant 0 : i32
    %c0_i32_1 = arith.constant 0 : i32
    return %c0_i32, %c0_i32_0 : i32, i32
  }
  func.func @transform_4(%arg0: i32, %arg1: i32) -> (i32, i32) {
    %c0_i32 = arith.constant 0 : i32
    %c0_i32_0 = arith.constant 0 : i32
    %c0_i32_1 = arith.constant 0 : i32
    return %c0_i32, %c0_i32_0 : i32, i32
  }
  func.func @transform_5(%arg0: i32, %arg1: i32) -> (i32, i32) {
    %c0_i32 = arith.constant 0 : i32
    %c0_i32_0 = arith.constant 0 : i32
    %c0_i32_1 = arith.constant 0 : i32
    return %c0_i32, %c0_i32_0 : i32, i32
  }
  func.func @transform_6(%arg0: i32, %arg1: i32) -> (i32, i32) {
    %c0_i32 = arith.constant 0 : i32
    %c0_i32_0 = arith.constant 0 : i32
    %c0_i32_1 = arith.constant 0 : i32
    return %c0_i32, %c0_i32_0 : i32, i32
  }
  func.func @transform_7(%arg0: i32, %arg1: i32) -> (i32, i32, i32) {
    %c0_i32 = arith.constant 0 : i32
    %c0_i32_0 = arith.constant 0 : i32
    %c0_i32_1 = arith.constant 0 : i32
    %c0_i32_2 = arith.constant 0 : i32
    return %c0_i32, %c0_i32_0, %c0_i32_1 : i32, i32, i32
  }
  func.func @transform_8(%arg0: i32, %arg1: i32) -> (i32, i32) {
    %c0_i32 = arith.constant 0 : i32
    %c0_i32_0 = arith.constant 0 : i32
    %c0_i32_1 = arith.constant 0 : i32
    return %c0_i32, %c0_i32_0 : i32, i32
  }
  func.func @transform_9(%arg0: i32, %arg1: i32) -> (i32, i32) {
    %c0_i32 = arith.constant 0 : i32
    %c0_i32_0 = arith.constant 0 : i32
    %c0_i32_1 = arith.constant 0 : i32
    return %c0_i32, %c0_i32_0 : i32, i32
  }
  func.func @transform_10(%arg0: i32, %arg1: i32) -> (i32, i32) {
    %c0_i32 = arith.constant 0 : i32
    %c0_i32_0 = arith.constant 0 : i32
    %c0_i32_1 = arith.constant 0 : i32
    return %c0_i32, %c0_i32_0 : i32, i32
  }
  func.func @transform_11(%arg0: i32, %arg1: i32) -> (i32, i32, i32) {
    %c0_i32 = arith.constant 0 : i32
    %c0_i32_0 = arith.constant 0 : i32
    return %arg0, %arg1, %c0_i32 : i32, i32, i32
  }
}

</mosaic_0001>

<llo_original>
// kernel: tpu_custom_call.1
$region0: #{tpu_custom_call.1}
  #allocation0 [shape = 'u32[]', space=smem, size = 0x4, offset = 0x4, fixed_abs, tag = 'smem constant byte address 0x4 - core index']
  #allocation1 [shape = 'u32[144,128]{1,0:T(1,128)}', space=vmem, size = 0x12000, scoped, tag = 'internal scratch']
  #allocation2 [shape = 'bf16[4,8,8]{2,1,0:T(8,128)(2,1)}', space=vmem, size = 0x2000, scoped, tag = 'scratch operand']
  #allocation3 [shape = 'bf16[4,8,8]{2,1,0:T(8,128)(2,1)}', space=vmem, size = 0x2000, scoped, tag = 'scratch operand']
  %s0 = inlined_call_operand.hbm [shape: f32[2,8,32], index: 0, kind: input, shape index: {}]
  %s1 = inlined_call_operand.hbm [shape: bf16[32,32], index: 1, kind: input, shape index: {}]
  %s2 = inlined_call_operand.vmem [shape: f32[1,32], index: 2, kind: input, shape index: {}]
  %s3 = inlined_call_operand.hbm [shape: bf16[32,32], index: 3, kind: input, shape index: {}]
  %s4 = inlined_call_operand.vmem [shape: f32[1,32], index: 4, kind: input, shape index: {}]
  %s5 = inlined_call_operand.vmem [shape: bf16[32,32], index: 5, kind: input, shape index: {}]
  %s6 = inlined_call_operand.vmem [shape: f32[1,32], index: 6, kind: input, shape index: {}]
  %s7 = inlined_call_operand.hbm [shape: bf16[4,8,32], index: 7, kind: input, shape index: {}]
  %s8 = inlined_call_operand.vmem [shape: f32[1,32], index: 8, kind: input, shape index: {}]
  %s9 = inlined_call_operand.vmem [shape: f32[1,32], index: 9, kind: input, shape index: {}]
  %s10 = inlined_call_operand.vmem [shape: f32[1,32], index: 10, kind: input, shape index: {}]
  %s11 = inlined_call_operand.hbm [shape: f32[2,8,32], index: 11, kind: output, shape index: {}]
  %s12 = sld [smem:[#allocation0]]
  $region97: #{tpu_custom_call.1} parent=0
    _
  %s14 = ssub.s32 1, %s12
  %s15 = scalar_select 0, %s14, %s12
  $region1: #{tpu_custom_call.1} parent=0
    #allocation4 [shape = 'u8[8192]{0}', space=vmem, size = 0x2000, scoped, tag = 'input window, operand 0']
    #allocation5 [shape = 's32[2]{0}', space=sflag, size = 0x8, scoped, tag = 'scoped memory for tpu_custom_call.1']
    #allocation6 [shape = 's32[2]{0}', space=sflag, size = 0x8, scoped, tag = 'scoped memory for tpu_custom_call.1']
    #allocation7 [shape = 'u8[8192]{0}', space=vmem, size = 0x2000, scoped, tag = 'input window, operand 1, single buffered']
    #allocation8 [shape = 's32[1]{0}', space=sflag, size = 0x4, scoped, tag = 'scoped memory for tpu_custom_call.1']
    #allocation9 [shape = 'u8[8192]{0}', space=vmem, size = 0x2000, scoped, tag = 'input window, operand 3, single buffered']
    #allocation10 [shape = 'u8[8192]{0}', space=vmem, size = 0x2000, scoped, tag = 'input window, operand 7, single buffered']
    #allocation11 [shape = 's32[1]{0}', space=sflag, size = 0x4, scoped, tag = 'scoped memory for tpu_custom_call.1']
    #allocation12 [shape = 'u8[8192]{0}', space=vmem, size = 0x2000, scoped, tag = 'output window, operand 0']
    %16 = vsyncpa [#allocation5], 0
    %s17 = scalar_lea.sflag [#allocation5], 1
    %18 = vsyncpa %s17, 0
    %19 = vsyncpa [#allocation8], 0
    %20 = vsyncpa [#allocation11], 0
    %21 = vsyncpa [#allocation6], 0
    %s22 = scalar_lea.sflag [#allocation6], 1
    %23 = vsyncpa %s22, 0
    loop: start=0, step=1, limit=4
    $region2: #{tpu_custom_call.1} parent=1 // loop_pre_header
      _
    $region3: #{tpu_custom_call.1} parent=1 // loop_header
      %s25 = sphi 0, %s29
      %p26 = scmp.ge.s32.totalorder %s25, 4
      %s32 = sphi 0, %s44
      %s33 = sphi 0, %s40
      %s34 = sphi 0, %s32
      %s35 = sphi 0, %s33
      %s36 = sphi 0, %s34
      %s37 = sphi 0, %s35
      %s47 = sphi 0, %s49
      %s50 = sphi 0, %s47
      %s51 = sphi 0, %s50
      %s67 = sphi 0, %s51
      %s71 = sphi 0, %s71
      %s73 = sphi 0, %s71
      %s74 = sphi 0, %s73
      %s88 = sphi 0, %s74
      %s92 = sphi 0, %s92
      %s94 = sphi 0, %s92
      %s95 = sphi 0, %s94
      %s109 = sphi 0, %s95
      %s113 = sphi 0, %s113
      %s115 = sphi 0, %s113
      %s116 = sphi 0, %s115
      %s130 = sphi 0, %s116
      %s134 = sphi 0, %s134
      %s136 = sphi 0, %s134
      %s137 = sphi 0, %s136
      %s151 = sphi 0, %s137
      %s155 = sphi 0, %s155
      %s157 = sphi 0, %s155
      %s158 = sphi 0, %s157
      %s172 = sphi 0, %s158
      %s176 = sphi 0, %s176
      %s178 = sphi 0, %s176
      %s179 = sphi 0, %s178
      %s193 = sphi 0, %s179
      %s197 = sphi 0, %s197
      %s199 = sphi 0, %s197
      %s200 = sphi 0, %s199
      %s214 = sphi 0, %s200
      %s218 = sphi 0, %s218
      %s220 = sphi 0, %s218
      %s221 = sphi 0, %s220
      %s235 = sphi 0, %s221
      %s239 = sphi 0, %s239
      %s241 = sphi 0, %s239
      %s242 = sphi 0, %s241
      %s256 = sphi 0, %s242
      %s260 = sphi 0, %s260
      %s262 = sphi 0, %s260
      %s263 = sphi 0, %s262
      %s277 = sphi 0, %s263
      %s285 = sphi 0, %s287
      %s288 = sphi 0, %s285
      %s289 = sphi 0, %s288
      %s305 = sphi 0, %s289
    $region4: #{tpu_custom_call.1} parent=1 // loop_header_branch
      %28 = sbr.rel (%p26) target = $region8
    $region5: #{tpu_custom_call.1} parent=1 // loop_body
      %s30 = ssub.s32 %s25, 1
      %s31 = ssub.s32 %s25, 2
      %s38 = sadd.s32 1, %s33
      %p39 = scmp.ge.s32.totalorder %s38, 1
      %s40 = scalar_select %p39, 0, %s38
      %s41 = sadd.s32 1, %s32
      %s42 = scalar_select %p39, %s41, %s32
      %p43 = scmp.ge.s32.totalorder %s42, 2
      %s44 = scalar_select %p43, 0, %s42
      %s45 = ssub.s32 %s32, %s44
      %p46 = scmp.eq.s32.totalorder %s45, 0
      %s48 = sadd.s32 %s47, 1
      %s49 = scalar_select %p46, %s47, %s48
      %p52 = pneg %p46
      %p53 = scmp.eq.s32.totalorder %s25, 1
      %p54 = por %p52, %p53
      %p55 = scmp.ne.s32.totalorder %s47, %s50
      %p56 = scmp.eq.s32.totalorder %s25, 0
      %p57 = por %p55, %p56
      %p58 = scmp.ne.s32.totalorder %s47, %s50
      %p59 = scmp.eq.s32.totalorder %s30, 1
      %p60 = por %p58, %p59
      %p61 = scmp.ne.s32.totalorder %s50, %s51
      %p62 = scmp.eq.s32.totalorder %s30, 0
      %p63 = por %p61, %p62
      %p64 = scmp.ne.s32.totalorder %s50, %s51
      %p65 = scmp.eq.s32.totalorder %s31, 1
      %p66 = por %p64, %p65
      %p68 = scmp.ne.s32.totalorder %s51, %s67
      %p69 = scmp.eq.s32.totalorder %s31, 0
      %p70 = por %p68, %p69
      %s72 = sadd.s32 %s71, 1
      %p75 = scmp.eq.s32.totalorder %s25, 1
      %p76 = scmp.ne.s32.totalorder %s71, %s73
      %p77 = scmp.eq.s32.totalorder %s25, 0
      %p78 = por %p76, %p77
      %p79 = scmp.ne.s32.totalorder %s71, %s73
      %p80 = scmp.eq.s32.totalorder %s30, 1
      %p81 = por %p79, %p80
      %p82 = scmp.ne.s32.totalorder %s73, %s74
      %p83 = scmp.eq.s32.totalorder %s30, 0
      %p84 = por %p82, %p83
      %p85 = scmp.ne.s32.totalorder %s73, %s74
      %p86 = scmp.eq.s32.totalorder %s31, 1
      %p87 = por %p85, %p86
      %p89 = scmp.ne.s32.totalorder %s74, %s88
      %p90 = scmp.eq.s32.totalorder %s31, 0
      %p91 = por %p89, %p90
      %s93 = sadd.s32 %s92, 1
      %p96 = scmp.eq.s32.totalorder %s25, 1
      %p97 = scmp.ne.s32.totalorder %s92, %s94
      %p98 = scmp.eq.s32.totalorder %s25, 0
      %p99 = por %p97, %p98
      %p100 = scmp.ne.s32.totalorder %s92, %s94
      %p101 = scmp.eq.s32.totalorder %s30, 1
      %p102 = por %p100, %p101
      %p103 = scmp.ne.s32.totalorder %s94, %s95
      %p104 = scmp.eq.s32.totalorder %s30, 0
      %p105 = por %p103, %p104
      %p106 = scmp.ne.s32.totalorder %s94, %s95
      %p107 = scmp.eq.s32.totalorder %s31, 1
      %p108 = por %p106, %p107
      %p110 = scmp.ne.s32.totalorder %s95, %s109
      %p111 = scmp.eq.s32.totalorder %s31, 0
      %p112 = por %p110, %p111
      %s114 = sadd.s32 %s113, 1
      %p117 = scmp.eq.s32.totalorder %s25, 1
      %p118 = scmp.ne.s32.totalorder %s113, %s115
      %p119 = scmp.eq.s32.totalorder %s25, 0
      %p120 = por %p118, %p119
      %p121 = scmp.ne.s32.totalorder %s113, %s115
      %p122 = scmp.eq.s32.totalorder %s30, 1
      %p123 = por %p121, %p122
      %p124 = scmp.ne.s32.totalorder %s115, %s116
      %p125 = scmp.eq.s32.totalorder %s30, 0
      %p126 = por %p124, %p125
      %p127 = scmp.ne.s32.totalorder %s115, %s116
      %p128 = scmp.eq.s32.totalorder %s31, 1
      %p129 = por %p127, %p128
      %p131 = scmp.ne.s32.totalorder %s116, %s130
      %p132 = scmp.eq.s32.totalorder %s31, 0
      %p133 = por %p131, %p132
      %s135 = sadd.s32 %s134, 1
      %p138 = scmp.eq.s32.totalorder %s25, 1
      %p139 = scmp.ne.s32.totalorder %s134, %s136
      %p140 = scmp.eq.s32.totalorder %s25, 0
      %p141 = por %p139, %p140
      %p142 = scmp.ne.s32.totalorder %s134, %s136
      %p143 = scmp.eq.s32.totalorder %s30, 1
      %p144 = por %p142, %p143
      %p145 = scmp.ne.s32.totalorder %s136, %s137
      %p146 = scmp.eq.s32.totalorder %s30, 0
      %p147 = por %p145, %p146
      %p148 = scmp.ne.s32.totalorder %s136, %s137
      %p149 = scmp.eq.s32.totalorder %s31, 1
      %p150 = por %p148, %p149
      %p152 = scmp.ne.s32.totalorder %s137, %s151
      %p153 = scmp.eq.s32.totalorder %s31, 0
      %p154 = por %p152, %p153
      %s156 = sadd.s32 %s155, 1
      %p159 = scmp.eq.s32.totalorder %s25, 1
      %p160 = scmp.ne.s32.totalorder %s155, %s157
      %p161 = scmp.eq.s32.totalorder %s25, 0
      %p162 = por %p160, %p161
      %p163 = scmp.ne.s32.totalorder %s155, %s157
      %p164 = scmp.eq.s32.totalorder %s30, 1
      %p165 = por %p163, %p164
      %p166 = scmp.ne.s32.totalorder %s157, %s158
      %p167 = scmp.eq.s32.totalorder %s30, 0
      %p168 = por %p166, %p167
      %p169 = scmp.ne.s32.totalorder %s157, %s158
      %p170 = scmp.eq.s32.totalorder %s31, 1
      %p171 = por %p169, %p170
      %p173 = scmp.ne.s32.totalorder %s158, %s172
      %p174 = scmp.eq.s32.totalorder %s31, 0
      %p175 = por %p173, %p174
      %s177 = sadd.s32 %s176, 1
      %p180 = scmp.eq.s32.totalorder %s25, 1
      %p181 = scmp.ne.s32.totalorder %s176, %s178
      %p182 = scmp.eq.s32.totalorder %s25, 0
      %p183 = por %p181, %p182
      %p184 = scmp.ne.s32.totalorder %s176, %s178
      %p185 = scmp.eq.s32.totalorder %s30, 1
      %p186 = por %p184, %p185
      %p187 = scmp.ne.s32.totalorder %s178, %s179
      %p188 = scmp.eq.s32.totalorder %s30, 0
      %p189 = por %p187, %p188
      %p190 = scmp.ne.s32.totalorder %s178, %s179
      %p191 = scmp.eq.s32.totalorder %s31, 1
      %p192 = por %p190, %p191
      %p194 = scmp.ne.s32.totalorder %s179, %s193
      %p195 = scmp.eq.s32.totalorder %s31, 0
      %p196 = por %p194, %p195
      %s198 = sadd.s32 %s197, 1
      %p201 = scmp.eq.s32.totalorder %s25, 1
      %p202 = scmp.ne.s32.totalorder %s197, %s199
      %p203 = scmp.eq.s32.totalorder %s25, 0
      %p204 = por %p202, %p203
      %p205 = scmp.ne.s32.totalorder %s197, %s199
      %p206 = scmp.eq.s32.totalorder %s30, 1
      %p207 = por %p205, %p206
      %p208 = scmp.ne.s32.totalorder %s199, %s200
      %p209 = scmp.eq.s32.totalorder %s30, 0
      %p210 = por %p208, %p209
      %p211 = scmp.ne.s32.totalorder %s199, %s200
      %p212 = scmp.eq.s32.totalorder %s31, 1
      %p213 = por %p211, %p212
      %p215 = scmp.ne.s32.totalorder %s200, %s214
      %p216 = scmp.eq.s32.totalorder %s31, 0
      %p217 = por %p215, %p216
      %s219 = sadd.s32 %s218, 1
      %p222 = scmp.eq.s32.totalorder %s25, 1
      %p223 = scmp.ne.s32.totalorder %s218, %s220
      %p224 = scmp.eq.s32.totalorder %s25, 0
      %p225 = por %p223, %p224
      %p226 = scmp.ne.s32.totalorder %s218, %s220
      %p227 = scmp.eq.s32.totalorder %s30, 1
      %p228 = por %p226, %p227
      %p229 = scmp.ne.s32.totalorder %s220, %s221
      %p230 = scmp.eq.s32.totalorder %s30, 0
      %p231 = por %p229, %p230
      %p232 = scmp.ne.s32.totalorder %s220, %s221
      %p233 = scmp.eq.s32.totalorder %s31, 1
      %p234 = por %p232, %p233
      %p236 = scmp.ne.s32.totalorder %s221, %s235
      %p237 = scmp.eq.s32.totalorder %s31, 0
      %p238 = por %p236, %p237
      %s240 = sadd.s32 %s239, 1
      %p243 = scmp.eq.s32.totalorder %s25, 1
      %p244 = scmp.ne.s32.totalorder %s239, %s241
      %p245 = scmp.eq.s32.totalorder %s25, 0
      %p246 = por %p244, %p245
      %p247 = scmp.ne.s32.totalorder %s239, %s241
      %p248 = scmp.eq.s32.totalorder %s30, 1
      %p249 = por %p247, %p248
      %p250 = scmp.ne.s32.totalorder %s241, %s242
      %p251 = scmp.eq.s32.totalorder %s30, 0
      %p252 = por %p250, %p251
      %p253 = scmp.ne.s32.totalorder %s241, %s242
      %p254 = scmp.eq.s32.totalorder %s31, 1
      %p255 = por %p253, %p254
      %p257 = scmp.ne.s32.totalorder %s242, %s256
      %p258 = scmp.eq.s32.totalorder %s31, 0
      %p259 = por %p257, %p258
      %s261 = sadd.s32 %s260, 1
      %p264 = scmp.eq.s32.totalorder %s25, 1
      %p265 = scmp.ne.s32.totalorder %s260, %s262
      %p266 = scmp.eq.s32.totalorder %s25, 0
      %p267 = por %p265, %p266
      %p268 = scmp.ne.s32.totalorder %s260, %s262
      %p269 = scmp.eq.s32.totalorder %s30, 1
      %p270 = por %p268, %p269
      %p271 = scmp.ne.s32.totalorder %s262, %s263
      %p272 = scmp.eq.s32.totalorder %s30, 0
      %p273 = por %p271, %p272
      %p274 = scmp.ne.s32.totalorder %s262, %s263
      %p275 = scmp.eq.s32.totalorder %s31, 1
      %p276 = por %p274, %p275
      %p278 = scmp.ne.s32.totalorder %s263, %s277
      %p279 = scmp.eq.s32.totalorder %s31, 0
      %p280 = por %p278, %p279
      %s281 = ssub.s32 %s32, %s44
      %s282 = ssub.s32 %s33, %s40
      %s283 = sor.u32 %s281, %s282
      %p284 = scmp.eq.s32.totalorder %s283, 0
      %s286 = sadd.s32 %s285, 1
      %s287 = scalar_select %p284, %s285, %s286
      %p290 = pneg %p284
      %p291 = scmp.eq.s32.totalorder %s25, 1
      %p292 = por %p290, %p291
      %p293 = scmp.ne.s32.totalorder %s285, %s288
      %p294 = scmp.eq.s32.totalorder %s25, 0
      %p295 = por %p293, %p294
      %p296 = scmp.ne.s32.totalorder %s285, %s288
      %p297 = scmp.eq.s32.totalorder %s30, 1
      %p298 = por %p296, %p297
      %p299 = scmp.ne.s32.totalorder %s288, %s289
      %p300 = scmp.eq.s32.totalorder %s30, 0
      %p301 = por %p299, %p300
      %p302 = scmp.ne.s32.totalorder %s288, %s289
      %p303 = scmp.eq.s32.totalorder %s31, 1
      %p304 = por %p302, %p303
      %p306 = scmp.ne.s32.totalorder %s289, %s305
      %p307 = scmp.eq.s32.totalorder %s31, 0
      %p308 = por %p306, %p307
      %p309 = scmp.le.s32.totalorder 1, %s25
      %p310 = scmp.lt.s32.totalorder %s25, 3
      %p311 = pnand %p309, %p310
      %p312 = pneg %p311
      // Predicated region
      $region9: #{tpu_custom_call.1} parent=5 // pred_check
        _
      $region10: #{tpu_custom_call.1} parent=5 // pred_check_branch
        %314 = sbr.rel (%p311) target = $region12
      $region11: #{tpu_custom_call.1} parent=5 // pred_region
        %s315 = ssub.s32 %s25, 1
        // Predicated region
        $region13: #{tpu_custom_call.1} parent=11 // pred_check
          %p316 = pneg %p84
        $region14: #{tpu_custom_call.1} parent=11 // pred_check_branch
          %318 = sbr.rel (%p316) target = $region16
        $region15: #{tpu_custom_call.1} parent=11 // pred_region
          %s320 = ssub.s32 256, 256
          %321 = vsyncadd [#allocation8], %s320
          %s322 = sshll.u32 [#allocation7], 4
          %s323 = int_to_ptr.vmem [resolvable:$true] %s322
          %328 = dma.hbm_to_vmem [thread:$0]  %s1, 256, %s323, [#allocation8], 64, 64, 4
        $region16: #{tpu_custom_call.1} parent=11 // pred_fallthru
          _
        // Predicated region
        $region17: #{tpu_custom_call.1} parent=11 // pred_check
          %p329 = pneg %p105
        $region18: #{tpu_custom_call.1} parent=11 // pred_check_branch
          %331 = sbr.rel (%p329) target = $region20
        $region19: #{tpu_custom_call.1} parent=11 // pred_region
          _
        $region20: #{tpu_custom_call.1} parent=11 // pred_fallthru
          _
        // Predicated region
        $region21: #{tpu_custom_call.1} parent=11 // pred_check
          %p332 = pneg %p126
        $region22: #{tpu_custom_call.1} parent=11 // pred_check_branch
          %334 = sbr.rel (%p332) target = $region24
        $region23: #{tpu_custom_call.1} parent=11 // pred_region
          %s336 = ssub.s32 256, 256
          %337 = vsyncadd [#allocation8], %s336
          %s338 = sshll.u32 [#allocation9], 4
          %s339 = int_to_ptr.vmem [resolvable:$true] %s338
          %344 = dma.hbm_to_vmem [thread:$0]  %s3, 256, %s339, [#allocation8], 64, 64, 4
        $region24: #{tpu_custom_call.1} parent=11 // pred_fallthru
          _
        // Predicated region
        $region25: #{tpu_custom_call.1} parent=11 // pred_check
          %p345 = pneg %p147
        $region26: #{tpu_custom_call.1} parent=11 // pred_check_branch
          %347 = sbr.rel (%p345) target = $region28
        $region27: #{tpu_custom_call.1} parent=11 // pred_region
          _
        $region28: #{tpu_custom_call.1} parent=11 // pred_fallthru
          _
        // Predicated region
        $region29: #{tpu_custom_call.1} parent=11 // pred_check
          %p348 = pneg %p168
        $region30: #{tpu_custom_call.1} parent=11 // pred_check_branch
          %350 = sbr.rel (%p348) target = $region32
        $region31: #{tpu_custom_call.1} parent=11 // pred_region
          _
        $region32: #{tpu_custom_call.1} parent=11 // pred_fallthru
          _
        // Predicated region
        $region33: #{tpu_custom_call.1} parent=11 // pred_check
          %p351 = pneg %p189
        $region34: #{tpu_custom_call.1} parent=11 // pred_check_branch
          %353 = sbr.rel (%p351) target = $region36
        $region35: #{tpu_custom_call.1} parent=11 // pred_region
          _
        $region36: #{tpu_custom_call.1} parent=11 // pred_fallthru
          _
        // Predicated region
        $region37: #{tpu_custom_call.1} parent=11 // pred_check
          %p354 = pneg %p210
        $region38: #{tpu_custom_call.1} parent=11 // pred_check_branch
          %356 = sbr.rel (%p354) target = $region40
        $region39: #{tpu_custom_call.1} parent=11 // pred_region
          %s358 = ssub.s32 256, 256
          %359 = vsyncadd [#allocation11], %s358
          %s360 = sshll.u32 [#allocation10], 4
          %s361 = int_to_ptr.vmem [resolvable:$true] %s360
          %366 = dma.hbm_to_vmem [thread:$0]  %s7, 256, %s361, [#allocation11], 64, 64, 4
        $region40: #{tpu_custom_call.1} parent=11 // pred_fallthru
          _
        // Predicated region
        $region41: #{tpu_custom_call.1} parent=11 // pred_check
          %p367 = pneg %p231
        $region42: #{tpu_custom_call.1} parent=11 // pred_check_branch
          %369 = sbr.rel (%p367) target = $region44
        $region43: #{tpu_custom_call.1} parent=11 // pred_region
          _
        $region44: #{tpu_custom_call.1} parent=11 // pred_fallthru
          _
        // Predicated region
        $region45: #{tpu_custom_call.1} parent=11 // pred_check
          %p370 = pneg %p252
        $region46: #{tpu_custom_call.1} parent=11 // pred_check_branch
          %372 = sbr.rel (%p370) target = $region48
        $region47: #{tpu_custom_call.1} parent=11 // pred_region
          _
        $region48: #{tpu_custom_call.1} parent=11 // pred_fallthru
          _
        // Predicated region
        $region49: #{tpu_custom_call.1} parent=11 // pred_check
          %p373 = pneg %p273
        $region50: #{tpu_custom_call.1} parent=11 // pred_check_branch
          %375 = sbr.rel (%p373) target = $region52
        $region51: #{tpu_custom_call.1} parent=11 // pred_region
          _
        $region52: #{tpu_custom_call.1} parent=11 // pred_fallthru
          _
      $region12: #{tpu_custom_call.1} parent=5 // pred_fallthru
        _
      %p376 = scmp.lt.s32.totalorder %s25, 2
      // Predicated region
      $region53: #{tpu_custom_call.1} parent=5 // pred_check
        %p377 = pneg %p376
      $region54: #{tpu_custom_call.1} parent=5 // pred_check_branch
        %379 = sbr.rel (%p377) target = $region56
      $region55: #{tpu_custom_call.1} parent=5 // pred_region
        // Predicated region
        $region57: #{tpu_custom_call.1} parent=55 // pred_check
          %p380 = pneg %p57
        $region58: #{tpu_custom_call.1} parent=55 // pred_check_branch
          %382 = sbr.rel (%p380) target = $region60
        $region59: #{tpu_custom_call.1} parent=55 // pred_region
          %s383 = sand.u32 %s47, 1
          %s384 = scalar_lea.sflag [#allocation5], %s383
          %s385 = sand.u32 %s47, 1
          %s386 = smul.addr %s385, 8
          %s387 = scalar_lea.vmem [#allocation4], %s386
          %s389 = ssub.s32 128, 128
          %390 = vsyncadd %s384, %s389
          %s391 = smul.addr %s32, 128
          %s392 = scalar_lea.hbm %s0, %s391
          %s394 = sshll.u32 %s387, 4
          %s395 = int_to_ptr.vmem [resolvable:$true] %s394
          %397 = dma.hbm_to_vmem [thread:$0]  %s392, 128, %s395, %s384
        $region60: #{tpu_custom_call.1} parent=55 // pred_fallthru
          _
      $region56: #{tpu_custom_call.1} parent=5 // pred_fallthru
        _
      %p398 = scmp.le.s32.totalorder 1, %s25
      %p399 = scmp.lt.s32.totalorder %s25, 3
      %p400 = pnand %p398, %p399
      %p401 = pneg %p400
      // Predicated region
      $region61: #{tpu_custom_call.1} parent=5 // pred_check
        _
      $region62: #{tpu_custom_call.1} parent=5 // pred_check_branch
        %403 = sbr.rel (%p400) target = $region64
      $region63: #{tpu_custom_call.1} parent=5 // pred_region
        %s404 = ssub.s32 %s25, 1
        %s405 = sand.u32 %s50, 1
        %s406 = scalar_lea.sflag [#allocation5], %s405
        %s407 = sand.u32 %s50, 1
        %s408 = smul.addr %s407, 8
        %s409 = scalar_lea.vmem [#allocation4], %s408
        // Predicated region
        $region65: #{tpu_custom_call.1} parent=63 // pred_check
          %p410 = pneg %p63
        $region66: #{tpu_custom_call.1} parent=63 // pred_check_branch
          %412 = sbr.rel (%p410) target = $region68
        $region67: #{tpu_custom_call.1} parent=63 // pred_region
          %413 = dma.done %s406, 128
        $region68: #{tpu_custom_call.1} parent=63 // pred_fallthru
          _
        // Predicated region
        $region69: #{tpu_custom_call.1} parent=63 // pred_check
          %p414 = pneg %p84
        $region70: #{tpu_custom_call.1} parent=63 // pred_check_branch
          %416 = sbr.rel (%p414) target = $region72
        $region71: #{tpu_custom_call.1} parent=63 // pred_region
          %417 = dma.done [#allocation8], 256
        $region72: #{tpu_custom_call.1} parent=63 // pred_fallthru
          _
        // Predicated region
        $region73: #{tpu_custom_call.1} parent=63 // pred_check
          %p418 = pneg %p126
        $region74: #{tpu_custom_call.1} parent=63 // pred_check_branch
          %420 = sbr.rel (%p418) target = $region76
        $region75: #{tpu_custom_call.1} parent=63 // pred_region
          %421 = dma.done [#allocation8], 256
        $region76: #{tpu_custom_call.1} parent=63 // pred_fallthru
          _
        // Predicated region
        $region77: #{tpu_custom_call.1} parent=63 // pred_check
          %p422 = pneg %p210
        $region78: #{tpu_custom_call.1} parent=63 // pred_check_branch
          %424 = sbr.rel (%p422) target = $region80
        $region79: #{tpu_custom_call.1} parent=63 // pred_region
          %425 = dma.done [#allocation11], 256
        $region80: #{tpu_custom_call.1} parent=63 // pred_fallthru
          _
        %s426 = sand.u32 %s50, 1
        %s427 = scalar_lea.sflag [#allocation5], %s426
        %s428 = sand.u32 %s50, 1
        %s429 = smul.addr %s428, 8
        %s430 = scalar_lea.vmem [#allocation4], %s429
        %p431 = pneg %p63
        %p432 = pneg %p60
        %p433 = pneg %p84
        %p434 = pneg %p81
        %p435 = pneg %p105
        %p436 = pneg %p102
        %p437 = pneg %p126
        %p438 = pneg %p123
        %p439 = pneg %p147
        %p440 = pneg %p144
        %p441 = pneg %p168
        %p442 = pneg %p165
        %p443 = pneg %p189
        %p444 = pneg %p186
        %p445 = pneg %p210
        %p446 = pneg %p207
        %p447 = pneg %p231
        %p448 = pneg %p228
        %p449 = pneg %p252
        %p450 = pneg %p249
        %p451 = pneg %p273
        %p452 = pneg %p270
        %p453 = pneg %p301
        %p454 = pneg %p298
        %s455 = sand.u32 %s288, 1
        %s456 = scalar_lea.sflag [#allocation6], %s455
        %s457 = sand.u32 %s288, 1
        %s458 = smul.addr %s457, 8
        %s459 = scalar_lea.vmem [#allocation12], %s458
        %p461 = scmp.eq.s32.totalorder %s35, 0
        // Predicated region
        $region81: #{tpu_custom_call.1} parent=63 // pred_check
          %p462 = pneg %p461
        $region82: #{tpu_custom_call.1} parent=63 // pred_check_branch
          %464 = sbr.rel (%p462) target = $region84
        $region83: #{tpu_custom_call.1} parent=63 // pred_region
          %v465 = vld [vmem:[%s409] sm:$0xff]
          %v466 = vpack.c.bf16 %v465, %v465
          %v467 = vld [vmem:[#allocation9] sm:$0xf]
          %v468 = vld [vmem:[#allocation9 + $0x4] sm:$0xf]
          %v469 = vld [vmem:[#allocation9 + $0x8] sm:$0xf]
          %v470 = vld [vmem:[#allocation9 + $0xc] sm:$0xf]
          %v471 = vld [vmem:[%s4] sm:$0x1]
          %v473 = vlaneseq
          %v474 = vshrl.u32 %v473, 7
          %v475 = vsub.s32 0, %v474
          %v476 = vrot.slane %v471, %v475
          %v482 = vunpack.c.l.b16 %v467
          %v483 = vunpack.c.l.b16 %v468
          %v484 = vunpack.c.l.b16 %v469
          %v485 = vunpack.c.l.b16 %v470
          %v486 = vpack.c.b16 %v483, %v482
          %v487 = vpack.c.b16 %v485, %v484
          %vm490 = vcmask 261120
          %v492 = vsel %vm490, %v466, 0
          %494 = vmatprep.subr.bf16.mxu0 0
          %495 = vmatpush1.bf16.msra.mxu0 %v486
          %496 = vmatprep.subr.bf16.mxu0 0
          %497 = vmatpush1.bf16.msra.mxu0 %v487
          %498 = vmatprep.subr.bf16.mxu0 0
          %499 = vmatpush1.bf16.msra.mxu0 0
          %500 = vmatprep.subr.bf16.mxu0 0
          %501 = vmatpush1.bf16.msra.mxu0 0
          %502 = vmatprep.subr.bf16.mxu0 0
          %503 = vmatpush1.bf16.msra.mxu0 0
          %504 = vmatprep.subr.bf16.mxu0 0
          %505 = vmatpush1.bf16.msra.mxu0 0
          %506 = vmatprep.subr.bf16.mxu0 0
          %507 = vmatpush1.bf16.msra.mxu0 0
          %508 = vmatprep.subr.bf16.mxu0 0
          %509 = vmatpush1.bf16.msra.mxu0 0
          %510 = vmatprep.subr.bf16.mxu0 0
          %511 = vmatpush1.bf16.msra.mxu0 0
          %512 = vmatprep.subr.bf16.mxu0 0
          %513 = vmatpush1.bf16.msra.mxu0 0
          %514 = vmatprep.subr.bf16.mxu0 0
          %515 = vmatpush1.bf16.msra.mxu0 0
          %516 = vmatprep.subr.bf16.mxu0 0
          %517 = vmatpush1.bf16.msra.mxu0 0
          %518 = vmatprep.subr.bf16.mxu0 0
          %519 = vmatpush1.bf16.msra.mxu0 0
          %520 = vmatprep.subr.bf16.mxu0 0
          %521 = vmatpush1.bf16.msra.mxu0 0
          %522 = vmatprep.subr.bf16.mxu0 0
          %523 = vmatpush1.bf16.msra.mxu0 0
          %524 = vmatprep.subr.bf16.mxu0 0
          %525 = vmatpush1.bf16.msra.mxu0 0
          %526 = vmatprep.mubr.bf16.mxu0 0
          %527 = vmatmul.mubr.bf16.gmra.mrb[0].mxu0 %v492
          %v528 = vpop.f32.mrb[0].mxu0
          %v529 = vadd.f32 %v476, %v528
          %v530 = vpop.f32.mrb[0].mxu0
          %v531 = vpop.f32.mrb[0].mxu0
          %v532 = vpop.f32.mrb[0].mxu0
          %533 = vdwg.mxu0
          %v534 = vld [vmem:[%s5] sm:$0xf]
          %v535 = vld [vmem:[%s5 + $0x4] sm:$0xf]
          %v536 = vld [vmem:[%s5 + $0x8] sm:$0xf]
          %v537 = vld [vmem:[%s5 + $0xc] sm:$0xf]
          %v538 = vld [vmem:[%s6] sm:$0x1]
          %v540 = vlaneseq
          %v541 = vshrl.u32 %v540, 7
          %v542 = vsub.s32 0, %v541
          %v543 = vrot.slane %v538, %v542
          %v549 = vunpack.c.l.b16 %v534
          %v550 = vunpack.c.l.b16 %v535
          %v551 = vunpack.c.l.b16 %v536
          %v552 = vunpack.c.l.b16 %v537
          %v553 = vpack.c.b16 %v550, %v549
          %v554 = vpack.c.b16 %v552, %v551
          %557 = vmatprep.subr.bf16.mxu0 0
          %558 = vmatpush1.bf16.msra.mxu0 %v553
          %559 = vmatprep.subr.bf16.mxu0 0
          %560 = vmatpush1.bf16.msra.mxu0 %v554
          %561 = vmatprep.subr.bf16.mxu0 0
          %562 = vmatpush1.bf16.msra.mxu0 0
          %563 = vmatprep.subr.bf16.mxu0 0
          %564 = vmatpush1.bf16.msra.mxu0 0
          %565 = vmatprep.subr.bf16.mxu0 0
          %566 = vmatpush1.bf16.msra.mxu0 0
          %567 = vmatprep.subr.bf16.mxu0 0
          %568 = vmatpush1.bf16.msra.mxu0 0
          %569 = vmatprep.subr.bf16.mxu0 0
          %570 = vmatpush1.bf16.msra.mxu0 0
          %571 = vmatprep.subr.bf16.mxu0 0
          %572 = vmatpush1.bf16.msra.mxu0 0
          %573 = vmatprep.subr.bf16.mxu0 0
          %574 = vmatpush1.bf16.msra.mxu0 0
          %575 = vmatprep.subr.bf16.mxu0 0
          %576 = vmatpush1.bf16.msra.mxu0 0
          %577 = vmatprep.subr.bf16.mxu0 0
          %578 = vmatpush1.bf16.msra.mxu0 0
          %579 = vmatprep.subr.bf16.mxu0 0
          %580 = vmatpush1.bf16.msra.mxu0 0
          %581 = vmatprep.subr.bf16.mxu0 0
          %582 = vmatpush1.bf16.msra.mxu0 0
          %583 = vmatprep.subr.bf16.mxu0 0
          %584 = vmatpush1.bf16.msra.mxu0 0
          %585 = vmatprep.subr.bf16.mxu0 0
          %586 = vmatpush1.bf16.msra.mxu0 0
          %587 = vmatprep.subr.bf16.mxu0 0
          %588 = vmatpush1.bf16.msra.mxu0 0
          %589 = vmatprep.mubr.bf16.mxu0 0
          %590 = vmatmul.mubr.bf16.gmra.mrb[0].mxu0 %v492
          %v591 = vpop.f32.mrb[0].mxu0
          %v592 = vadd.f32 %v543, %v591
          %v593 = vpop.f32.mrb[0].mxu0
          %v594 = vpop.f32.mrb[0].mxu0
          %v595 = vpop.f32.mrb[0].mxu0
          %596 = vdwg.mxu0
          %597 = vxpose.xlu0.b32.start [1/16] %v529, 128
          %598 = vxpose.xlu0.b32.cont [2/16] 0.0, 128
          %599 = vxpose.xlu0.b32.cont [3/16] 0.0, 128
          %600 = vxpose.xlu0.b32.cont [4/16] 0.0, 128
          %601 = vxpose.xlu0.b32.cont [5/16] 0.0, 128
          %602 = vxpose.xlu0.b32.cont [6/16] 0.0, 128
          %603 = vxpose.xlu0.b32.cont [7/16] 0.0, 128
          %604 = vxpose.xlu0.b32.cont [8/16] 0.0, 128
          %605 = vxpose.xlu0.b32.cont [9/16] 0.0, 128
          %606 = vxpose.xlu0.b32.cont [10/16] 0.0, 128
          %607 = vxpose.xlu0.b32.cont [11/16] 0.0, 128
          %608 = vxpose.xlu0.b32.cont [12/16] 0.0, 128
          %609 = vxpose.xlu0.b32.cont [13/16] 0.0, 128
          %610 = vxpose.xlu0.b32.cont [14/16] 0.0, 128
          %611 = vxpose.xlu0.b32.cont [15/16] 0.0, 128
          %612 = vxpose.xlu0.b32.end [16/16] 0.0, 128
          %v613 = vpop.trf.xlu0
          %v614 = vpop.trf.xlu0
          %v615 = vpop.trf.xlu0
          %v616 = vpop.trf.xlu0
          %v617 = vpop.trf.xlu0
          %v618 = vpop.trf.xlu0
          %v619 = vpop.trf.xlu0
          %v620 = vpop.trf.xlu0
          %v621 = vpop.trf.xlu0
          %v622 = vpop.trf.xlu0
          %v623 = vpop.trf.xlu0
          %v624 = vpop.trf.xlu0
          %v625 = vpop.trf.xlu0
          %v626 = vpop.trf.xlu0
          %v627 = vpop.trf.xlu0
          %v628 = vpop.trf.xlu0
          %v629 = vpack.c.bf16 %v613, %v613
          %vm630 = vcmask 60416
          %631 = vst.msk [vmem:[#allocation2] sm:$0xf] %vm630, %v629
          %v632 = vpack.c.bf16 %v592, %v592
          %633 = vst.msk [vmem:[#allocation3] sm:$0xf] %vm630, %v632
          %635 = vrot.lane.b32.xlu0 %v529, 120
          %v636 = vpop.permute.xlu0 %635
          %638 = vxpose.xlu0.b32.start [1/16] %v636, 128
          %639 = vxpose.xlu0.b32.cont [2/16] 0.0, 128
          %640 = vxpose.xlu0.b32.cont [3/16] 0.0, 128
          %641 = vxpose.xlu0.b32.cont [4/16] 0.0, 128
          %642 = vxpose.xlu0.b32.cont [5/16] 0.0, 128
          %643 = vxpose.xlu0.b32.cont [6/16] 0.0, 128
          %644 = vxpose.xlu0.b32.cont [7/16] 0.0, 128
          %645 = vxpose.xlu0.b32.cont [8/16] 0.0, 128
          %646 = vxpose.xlu0.b32.cont [9/16] 0.0, 128
          %647 = vxpose.xlu0.b32.cont [10/16] 0.0, 128
          %648 = vxpose.xlu0.b32.cont [11/16] 0.0, 128
          %649 = vxpose.xlu0.b32.cont [12/16] 0.0, 128
          %650 = vxpose.xlu0.b32.cont [13/16] 0.0, 128
          %651 = vxpose.xlu0.b32.cont [14/16] 0.0, 128
          %652 = vxpose.xlu0.b32.cont [15/16] 0.0, 128
          %653 = vxpose.xlu0.b32.end [16/16] 0.0, 128
          %v654 = vpop.trf.xlu0
          %v655 = vpop.trf.xlu0
          %v656 = vpop.trf.xlu0
          %v657 = vpop.trf.xlu0
          %v658 = vpop.trf.xlu0
          %v659 = vpop.trf.xlu0
          %v660 = vpop.trf.xlu0
          %v661 = vpop.trf.xlu0
          %v662 = vpop.trf.xlu0
          %v663 = vpop.trf.xlu0
          %v664 = vpop.trf.xlu0
          %v665 = vpop.trf.xlu0
          %v666 = vpop.trf.xlu0
          %v667 = vpop.trf.xlu0
          %v668 = vpop.trf.xlu0
          %v669 = vpop.trf.xlu0
          %v670 = vpack.c.bf16 %v654, %v654
          %s671 = scalar_lea.vmem [#allocation2], 4
          %672 = vst.msk [vmem:[%s671] sm:$0xf] %vm630, %v670
          %v674 = vunpack.c.l.b16 %v632
          %v675 = vpack.c.b16 %v674, %v674
          %676 = vrot.lane.b32.xlu0 %v675, 120
          %v677 = vpop.permute.xlu0 %676
          %s679 = scalar_lea.vmem [#allocation3], 4
          %680 = vst.msk [vmem:[%s679] sm:$0xf] %vm630, %v677
          %681 = vrot.lane.b32.xlu0 %v529, 112
          %v682 = vpop.permute.xlu0 %681
          %684 = vxpose.xlu0.b32.start [1/16] %v682, 128
          %685 = vxpose.xlu0.b32.cont [2/16] 0.0, 128
          %686 = vxpose.xlu0.b32.cont [3/16] 0.0, 128
          %687 = vxpose.xlu0.b32.cont [4/16] 0.0, 128
          %688 = vxpose.xlu0.b32.cont [5/16] 0.0, 128
          %689 = vxpose.xlu0.b32.cont [6/16] 0.0, 128
          %690 = vxpose.xlu0.b32.cont [7/16] 0.0, 128
          %691 = vxpose.xlu0.b32.cont [8/16] 0.0, 128
          %692 = vxpose.xlu0.b32.cont [9/16] 0.0, 128
          %693 = vxpose.xlu0.b32.cont [10/16] 0.0, 128
          %694 = vxpose.xlu0.b32.cont [11/16] 0.0, 128
          %695 = vxpose.xlu0.b32.cont [12/16] 0.0, 128
          %696 = vxpose.xlu0.b32.cont [13/16] 0.0, 128
          %697 = vxpose.xlu0.b32.cont [14/16] 0.0, 128
          %698 = vxpose.xlu0.b32.cont [15/16] 0.0, 128
          %699 = vxpose.xlu0.b32.end [16/16] 0.0, 128
          %v700 = vpop.trf.xlu0
          %v701 = vpop.trf.xlu0
          %v702 = vpop.trf.xlu0
          %v703 = vpop.trf.xlu0
          %v704 = vpop.trf.xlu0
          %v705 = vpop.trf.xlu0
          %v706 = vpop.trf.xlu0
          %v707 = vpop.trf.xlu0
          %v708 = vpop.trf.xlu0
          %v709 = vpop.trf.xlu0
          %v710 = vpop.trf.xlu0
          %v711 = vpop.trf.xlu0
          %v712 = vpop.trf.xlu0
          %v713 = vpop.trf.xlu0
          %v714 = vpop.trf.xlu0
          %v715 = vpop.trf.xlu0
          %v716 = vpack.c.bf16 %v700, %v700
          %s717 = scalar_lea.vmem [#allocation2], 8
          %718 = vst.msk [vmem:[%s717] sm:$0xf] %vm630, %v716
          %719 = vrot.lane.b32.xlu0 %v675, 112
          %v720 = vpop.permute.xlu0 %719
          %s722 = scalar_lea.vmem [#allocation3], 8
          %723 = vst.msk [vmem:[%s722] sm:$0xf] %vm630, %v720
          %724 = vrot.lane.b32.xlu0 %v529, 104
          %v725 = vpop.permute.xlu0 %724
          %727 = vxpose.xlu0.b32.start [1/16] %v725, 128
          %728 = vxpose.xlu0.b32.cont [2/16] 0.0, 128
          %729 = vxpose.xlu0.b32.cont [3/16] 0.0, 128
          %730 = vxpose.xlu0.b32.cont [4/16] 0.0, 128
          %731 = vxpose.xlu0.b32.cont [5/16] 0.0, 128
          %732 = vxpose.xlu0.b32.cont [6/16] 0.0, 128
          %733 = vxpose.xlu0.b32.cont [7/16] 0.0, 128
          %734 = vxpose.xlu0.b32.cont [8/16] 0.0, 128
          %735 = vxpose.xlu0.b32.cont [9/16] 0.0, 128
          %736 = vxpose.xlu0.b32.cont [10/16] 0.0, 128
          %737 = vxpose.xlu0.b32.cont [11/16] 0.0, 128
          %738 = vxpose.xlu0.b32.cont [12/16] 0.0, 128
          %739 = vxpose.xlu0.b32.cont [13/16] 0.0, 128
          %740 = vxpose.xlu0.b32.cont [14/16] 0.0, 128
          %741 = vxpose.xlu0.b32.cont [15/16] 0.0, 128
          %742 = vxpose.xlu0.b32.end [16/16] 0.0, 128
          %v743 = vpop.trf.xlu0
          %v744 = vpop.trf.xlu0
          %v745 = vpop.trf.xlu0
          %v746 = vpop.trf.xlu0
          %v747 = vpop.trf.xlu0
          %v748 = vpop.trf.xlu0
          %v749 = vpop.trf.xlu0
          %v750 = vpop.trf.xlu0
          %v751 = vpop.trf.xlu0
          %v752 = vpop.trf.xlu0
          %v753 = vpop.trf.xlu0
          %v754 = vpop.trf.xlu0
          %v755 = vpop.trf.xlu0
          %v756 = vpop.trf.xlu0
          %v757 = vpop.trf.xlu0
          %v758 = vpop.trf.xlu0
          %v759 = vpack.c.bf16 %v743, %v743
          %s760 = scalar_lea.vmem [#allocation2], 12
          %761 = vst.msk [vmem:[%s760] sm:$0xf] %vm630, %v759
          %762 = vrot.lane.b32.xlu0 %v675, 104
          %v763 = vpop.permute.xlu0 %762
          %s765 = scalar_lea.vmem [#allocation3], 12
          %766 = vst.msk [vmem:[%s765] sm:$0xf] %vm630, %v763
        $region84: #{tpu_custom_call.1} parent=63 // pred_fallthru
          _
        %s767 = smul.u32 %s35, 8
        %s768 = scalar_lea.vmem %s409, %s767 [#allocation4]
        %v769 = vld [vmem:[%s768] sm:$0xff]
        %v770 = vpack.c.bf16 %v769, %v769
        %v771 = vld [vmem:[#allocation7] sm:$0xf]
        %v772 = vld [vmem:[#allocation7 + $0x4] sm:$0xf]
        %v773 = vld [vmem:[#allocation7 + $0x8] sm:$0xf]
        %v774 = vld [vmem:[#allocation7 + $0xc] sm:$0xf]
        %v775 = vld [vmem:[%s2] sm:$0x1]
        %v777 = vlaneseq
        %v778 = vshrl.u32 %v777, 7
        %v779 = vsub.s32 0, %v778
        %v780 = vrot.slane %v775, %v779
        %v786 = vunpack.c.l.b16 %v771
        %v787 = vunpack.c.l.b16 %v772
        %v788 = vunpack.c.l.b16 %v773
        %v789 = vunpack.c.l.b16 %v774
        %v790 = vpack.c.b16 %v787, %v786
        %v791 = vpack.c.b16 %v789, %v788
        %vm794 = vcmask 261120
        %v796 = vsel %vm794, %v770, 0
        %798 = vmatprep.subr.bf16.mxu0 0
        %799 = vmatpush1.bf16.msra.mxu0 %v790
        %800 = vmatprep.subr.bf16.mxu0 0
        %801 = vmatpush1.bf16.msra.mxu0 %v791
        %802 = vmatprep.subr.bf16.mxu0 0
        %803 = vmatpush1.bf16.msra.mxu0 0
        %804 = vmatprep.subr.bf16.mxu0 0
        %805 = vmatpush1.bf16.msra.mxu0 0
        %806 = vmatprep.subr.bf16.mxu0 0
        %807 = vmatpush1.bf16.msra.mxu0 0
        %808 = vmatprep.subr.bf16.mxu0 0
        %809 = vmatpush1.bf16.msra.mxu0 0
        %810 = vmatprep.subr.bf16.mxu0 0
        %811 = vmatpush1.bf16.msra.mxu0 0
        %812 = vmatprep.subr.bf16.mxu0 0
        %813 = vmatpush1.bf16.msra.mxu0 0
        %814 = vmatprep.subr.bf16.mxu0 0
        %815 = vmatpush1.bf16.msra.mxu0 0
        %816 = vmatprep.subr.bf16.mxu0 0
        %817 = vmatpush1.bf16.msra.mxu0 0
        %818 = vmatprep.subr.bf16.mxu0 0
        %819 = vmatpush1.bf16.msra.mxu0 0
        %820 = vmatprep.subr.bf16.mxu0 0
        %821 = vmatpush1.bf16.msra.mxu0 0
        %822 = vmatprep.subr.bf16.mxu0 0
        %823 = vmatpush1.bf16.msra.mxu0 0
        %824 = vmatprep.subr.bf16.mxu0 0
        %825 = vmatpush1.bf16.msra.mxu0 0
        %826 = vmatprep.subr.bf16.mxu0 0
        %827 = vmatpush1.bf16.msra.mxu0 0
        %828 = vmatprep.subr.bf16.mxu0 0
        %829 = vmatpush1.bf16.msra.mxu0 0
        %830 = vmatprep.mubr.bf16.mxu0 0
        %831 = vmatmul.mubr.bf16.gmra.mrb[0].mxu0 %v796
        %v832 = vpop.f32.mrb[0].mxu0
        %v833 = vadd.f32 %v780, %v832
        %v834 = vpop.f32.mrb[0].mxu0
        %v835 = vpop.f32.mrb[0].mxu0
        %v836 = vpop.f32.mrb[0].mxu0
        %837 = vdwg.mxu0
        %v838 = vpack.c.bf16 %v833, %v833
        %v839 = vld [vmem:[#allocation2] sm:$0xf]
        %vm840 = vcmask 64512
        %v842 = vsel %vm840, %v838, 0
        %vm844 = vcmask 1043456
        %v846 = vsel %vm844, %v839, 0
        %848 = vmatprep.subr.bf16.mxu0 0
        %849 = vmatpush1.bf16.msra.mxu0 %v846
        %850 = vmatprep.subr.bf16.mxu0 0
        %851 = vmatpush1.bf16.msra.mxu0 0
        %852 = vmatprep.subr.bf16.mxu0 0
        %853 = vmatpush1.bf16.msra.mxu0 0
        %854 = vmatprep.subr.bf16.mxu0 0
        %855 = vmatpush1.bf16.msra.mxu0 0
        %856 = vmatprep.subr.bf16.mxu0 0
        %857 = vmatpush1.bf16.msra.mxu0 0
        %858 = vmatprep.subr.bf16.mxu0 0
        %859 = vmatpush1.bf16.msra.mxu0 0
        %860 = vmatprep.subr.bf16.mxu0 0
        %861 = vmatpush1.bf16.msra.mxu0 0
        %862 = vmatprep.subr.bf16.mxu0 0
        %863 = vmatpush1.bf16.msra.mxu0 0
        %864 = vmatprep.subr.bf16.mxu0 0
        %865 = vmatpush1.bf16.msra.mxu0 0
        %866 = vmatprep.subr.bf16.mxu0 0
        %867 = vmatpush1.bf16.msra.mxu0 0
        %868 = vmatprep.subr.bf16.mxu0 0
        %869 = vmatpush1.bf16.msra.mxu0 0
        %870 = vmatprep.subr.bf16.mxu0 0
        %871 = vmatpush1.bf16.msra.mxu0 0
        %872 = vmatprep.subr.bf16.mxu0 0
        %873 = vmatpush1.bf16.msra.mxu0 0
        %874 = vmatprep.subr.bf16.mxu0 0
        %875 = vmatpush1.bf16.msra.mxu0 0
        %876 = vmatprep.subr.bf16.mxu0 0
        %877 = vmatpush1.bf16.msra.mxu0 0
        %878 = vmatprep.subr.bf16.mxu0 0
        %879 = vmatpush1.bf16.msra.mxu0 0
        %880 = vmatprep.mubr.bf16.mxu0 0
        %881 = vmatmul.mubr.bf16.gmra.mrb[0].mxu0 %v842
        %v882 = vpop.f32.mrb[0].mxu0
        %v883 = vadd.f32 0.0, %v882
        %v884 = vpop.f32.mrb[0].mxu0
        %v885 = vpop.f32.mrb[0].mxu0
        %v886 = vpop.f32.mrb[0].mxu0
        %887 = vdwg.mxu0
        %v888 = vsel %vm840, %v883, -inf
        %889 = vmax.xlane.f32.xlu0 %v888
        %v890 = vpop.xlane.xlu0 %889
        %v891 = vsub.f32 %v883, %v890
        %v892 = vmul.f32 %v891, 1.442695
        %v893 = vpow.pop %v892
        %v894 = vsel %vm840, %v893, 0.0
        %895 = vadd.xlane.f32.xlu0 %v894
        %v896 = vpop.xlane.xlu0 %895
        %v897 = vpack.c.bf16 %v893, %v893
        %v898 = vld [vmem:[#allocation3] sm:$0xf]
        %v900 = vsel %vm840, %v897, 0
        %v903 = vsel %vm844, %v898, 0
        %905 = vmatprep.subr.bf16.mxu0 0
        %906 = vmatpush1.bf16.msra.mxu0 %v903
        %907 = vmatprep.subr.bf16.mxu0 0
        %908 = vmatpush1.bf16.msra.mxu0 0
        %909 = vmatprep.subr.bf16.mxu0 0
        %910 = vmatpush1.bf16.msra.mxu0 0
        %911 = vmatprep.subr.bf16.mxu0 0
        %912 = vmatpush1.bf16.msra.mxu0 0
        %913 = vmatprep.subr.bf16.mxu0 0
        %914 = vmatpush1.bf16.msra.mxu0 0
        %915 = vmatprep.subr.bf16.mxu0 0
        %916 = vmatpush1.bf16.msra.mxu0 0
        %917 = vmatprep.subr.bf16.mxu0 0
        %918 = vmatpush1.bf16.msra.mxu0 0
        %919 = vmatprep.subr.bf16.mxu0 0
        %920 = vmatpush1.bf16.msra.mxu0 0
        %921 = vmatprep.subr.bf16.mxu0 0
        %922 = vmatpush1.bf16.msra.mxu0 0
        %923 = vmatprep.subr.bf16.mxu0 0
        %924 = vmatpush1.bf16.msra.mxu0 0
        %925 = vmatprep.subr.bf16.mxu0 0
        %926 = vmatpush1.bf16.msra.mxu0 0
        %927 = vmatprep.subr.bf16.mxu0 0
        %928 = vmatpush1.bf16.msra.mxu0 0
        %929 = vmatprep.subr.bf16.mxu0 0
        %930 = vmatpush1.bf16.msra.mxu0 0
        %931 = vmatprep.subr.bf16.mxu0 0
        %932 = vmatpush1.bf16.msra.mxu0 0
        %933 = vmatprep.subr.bf16.mxu0 0
        %934 = vmatpush1.bf16.msra.mxu0 0
        %935 = vmatprep.subr.bf16.mxu0 0
        %936 = vmatpush1.bf16.msra.mxu0 0
        %937 = vmatprep.mubr.bf16.mxu0 0
        %938 = vmatmul.mubr.bf16.gmra.mrb[0].mxu0 %v900
        %v939 = vpop.f32.mrb[0].mxu0
        %v940 = vadd.f32 0.0, %v939
        %v941 = vpop.f32.mrb[0].mxu0
        %v942 = vpop.f32.mrb[0].mxu0
        %v943 = vpop.f32.mrb[0].mxu0
        %944 = vdwg.mxu0
        %v945 = vrcp.pop %v896
        %v946 = vmul.f32 %v940, %v945
        %v947 = vpack.c.bf16 %v946, %v946
        %v948 = vld [vmem:[#allocation10] sm:$0xf]
        %s949 = scalar_lea.vmem [#allocation2], 4
        %v950 = vld [vmem:[%s949] sm:$0xf]
        %952 = vrot.lane.b32.xlu0 %v838, 120
        %v953 = vpop.permute.xlu0 %952
        %v955 = vsel %vm840, %v953, 0
        %v958 = vsel %vm844, %v950, 0
        %960 = vmatprep.subr.bf16.mxu0 0
        %961 = vmatpush1.bf16.msra.mxu0 %v958
        %962 = vmatprep.subr.bf16.mxu0 0
        %963 = vmatpush1.bf16.msra.mxu0 0
        %964 = vmatprep.subr.bf16.mxu0 0
        %965 = vmatpush1.bf16.msra.mxu0 0
        %966 = vmatprep.subr.bf16.mxu0 0
        %967 = vmatpush1.bf16.msra.mxu0 0
        %968 = vmatprep.subr.bf16.mxu0 0
        %969 = vmatpush1.bf16.msra.mxu0 0
        %970 = vmatprep.subr.bf16.mxu0 0
        %971 = vmatpush1.bf16.msra.mxu0 0
        %972 = vmatprep.subr.bf16.mxu0 0
        %973 = vmatpush1.bf16.msra.mxu0 0
        %974 = vmatprep.subr.bf16.mxu0 0
        %975 = vmatpush1.bf16.msra.mxu0 0
        %976 = vmatprep.subr.bf16.mxu0 0
        %977 = vmatpush1.bf16.msra.mxu0 0
        %978 = vmatprep.subr.bf16.mxu0 0
        %979 = vmatpush1.bf16.msra.mxu0 0
        %980 = vmatprep.subr.bf16.mxu0 0
        %981 = vmatpush1.bf16.msra.mxu0 0
        %982 = vmatprep.subr.bf16.mxu0 0
        %983 = vmatpush1.bf16.msra.mxu0 0
        %984 = vmatprep.subr.bf16.mxu0 0
        %985 = vmatpush1.bf16.msra.mxu0 0
        %986 = vmatprep.subr.bf16.mxu0 0
        %987 = vmatpush1.bf16.msra.mxu0 0
        %988 = vmatprep.subr.bf16.mxu0 0
        %989 = vmatpush1.bf16.msra.mxu0 0
        %990 = vmatprep.subr.bf16.mxu0 0
        %991 = vmatpush1.bf16.msra.mxu0 0
        %992 = vmatprep.mubr.bf16.mxu0 0
        %993 = vmatmul.mubr.bf16.gmra.mrb[0].mxu0 %v955
        %v994 = vpop.f32.mrb[0].mxu0
        %v995 = vadd.f32 0.0, %v994
        %v996 = vpop.f32.mrb[0].mxu0
        %v997 = vpop.f32.mrb[0].mxu0
        %v998 = vpop.f32.mrb[0].mxu0
        %999 = vdwg.mxu0
        %v1000 = vsel %vm840, %v995, -inf
        %1001 = vmax.xlane.f32.xlu0 %v1000
        %v1002 = vpop.xlane.xlu0 %1001
        %v1003 = vsub.f32 %v995, %v1002
        %v1004 = vmul.f32 %v1003, 1.442695
        %v1005 = vpow.pop %v1004
        %v1006 = vsel %vm840, %v1005, 0.0
        %1007 = vadd.xlane.f32.xlu0 %v1006
        %v1008 = vpop.xlane.xlu0 %1007
        %v1009 = vpack.c.bf16 %v1005, %v1005
        %s1010 = scalar_lea.vmem [#allocation3], 4
        %v1011 = vld [vmem:[%s1010] sm:$0xf]
        %v1013 = vsel %vm840, %v1009, 0
        %v1016 = vsel %vm844, %v1011, 0
        %1018 = vmatprep.subr.bf16.mxu0 0
        %1019 = vmatpush1.bf16.msra.mxu0 %v1016
        %1020 = vmatprep.subr.bf16.mxu0 0
        %1021 = vmatpush1.bf16.msra.mxu0 0
        %1022 = vmatprep.subr.bf16.mxu0 0
        %1023 = vmatpush1.bf16.msra.mxu0 0
        %1024 = vmatprep.subr.bf16.mxu0 0
        %1025 = vmatpush1.bf16.msra.mxu0 0
        %1026 = vmatprep.subr.bf16.mxu0 0
        %1027 = vmatpush1.bf16.msra.mxu0 0
        %1028 = vmatprep.subr.bf16.mxu0 0
        %1029 = vmatpush1.bf16.msra.mxu0 0
        %1030 = vmatprep.subr.bf16.mxu0 0
        %1031 = vmatpush1.bf16.msra.mxu0 0
        %1032 = vmatprep.subr.bf16.mxu0 0
        %1033 = vmatpush1.bf16.msra.mxu0 0
        %1034 = vmatprep.subr.bf16.mxu0 0
        %1035 = vmatpush1.bf16.msra.mxu0 0
        %1036 = vmatprep.subr.bf16.mxu0 0
        %1037 = vmatpush1.bf16.msra.mxu0 0
        %1038 = vmatprep.subr.bf16.mxu0 0
        %1039 = vmatpush1.bf16.msra.mxu0 0
        %1040 = vmatprep.subr.bf16.mxu0 0
        %1041 = vmatpush1.bf16.msra.mxu0 0
        %1042 = vmatprep.subr.bf16.mxu0 0
        %1043 = vmatpush1.bf16.msra.mxu0 0
        %1044 = vmatprep.subr.bf16.mxu0 0
        %1045 = vmatpush1.bf16.msra.mxu0 0
        %1046 = vmatprep.subr.bf16.mxu0 0
        %1047 = vmatpush1.bf16.msra.mxu0 0
        %1048 = vmatprep.subr.bf16.mxu0 0
        %1049 = vmatpush1.bf16.msra.mxu0 0
        %1050 = vmatprep.mubr.bf16.mxu0 0
        %1051 = vmatmul.mubr.bf16.gmra.mrb[0].mxu0 %v1013
        %v1052 = vpop.f32.mrb[0].mxu0
        %v1053 = vadd.f32 0.0, %v1052
        %v1054 = vpop.f32.mrb[0].mxu0
        %v1055 = vpop.f32.mrb[0].mxu0
        %v1056 = vpop.f32.mrb[0].mxu0
        %1057 = vdwg.mxu0
        %v1058 = vrcp.pop %v1008
        %v1059 = vmul.f32 %v1053, %v1058
        %v1060 = vpack.c.bf16 %v1059, %v1059
        %s1061 = scalar_lea.vmem [#allocation10], 4
        %v1062 = vld [vmem:[%s1061] sm:$0xf]
        %v1064 = vsel %vm840, %v1060, 0
        %v1067 = vsel %vm844, %v1062, 0
        %1069 = vmatprep.subr.bf16.mxu0 0
        %1070 = vmatpush1.bf16.msra.mxu0 %v1067
        %1071 = vmatprep.subr.bf16.mxu0 0
        %1072 = vmatpush1.bf16.msra.mxu0 0
        %1073 = vmatprep.subr.bf16.mxu0 0
        %1074 = vmatpush1.bf16.msra.mxu0 0
        %1075 = vmatprep.subr.bf16.mxu0 0
        %1076 = vmatpush1.bf16.msra.mxu0 0
        %1077 = vmatprep.subr.bf16.mxu0 0
        %1078 = vmatpush1.bf16.msra.mxu0 0
        %1079 = vmatprep.subr.bf16.mxu0 0
        %1080 = vmatpush1.bf16.msra.mxu0 0
        %1081 = vmatprep.subr.bf16.mxu0 0
        %1082 = vmatpush1.bf16.msra.mxu0 0
        %1083 = vmatprep.subr.bf16.mxu0 0
        %1084 = vmatpush1.bf16.msra.mxu0 0
        %1085 = vmatprep.subr.bf16.mxu0 0
        %1086 = vmatpush1.bf16.msra.mxu0 0
        %1087 = vmatprep.subr.bf16.mxu0 0
        %1088 = vmatpush1.bf16.msra.mxu0 0
        %1089 = vmatprep.subr.bf16.mxu0 0
        %1090 = vmatpush1.bf16.msra.mxu0 0
        %1091 = vmatprep.subr.bf16.mxu0 0
        %1092 = vmatpush1.bf16.msra.mxu0 0
        %1093 = vmatprep.subr.bf16.mxu0 0
        %1094 = vmatpush1.bf16.msra.mxu0 0
        %1095 = vmatprep.subr.bf16.mxu0 0
        %1096 = vmatpush1.bf16.msra.mxu0 0
        %1097 = vmatprep.subr.bf16.mxu0 0
        %1098 = vmatpush1.bf16.msra.mxu0 0
        %1099 = vmatprep.subr.bf16.mxu0 0
        %1100 = vmatpush1.bf16.msra.mxu0 0
        %1101 = vmatprep.mubr.bf16.mxu0 0
        %1102 = vmatmul.mubr.bf16.gmra.mrb[0].mxu0 %v1064
        %v1103 = vpop.f32.mrb[0].mxu0
        %v1104 = vadd.f32 0.0, %v1103
        %v1105 = vpop.f32.mrb[0].mxu0
        %v1106 = vpop.f32.mrb[0].mxu0
        %v1107 = vpop.f32.mrb[0].mxu0
        %1108 = vdwg.mxu0
        %v1110 = vsel %vm840, %v947, 0
        %v1113 = vsel %vm844, %v948, 0
        %1115 = vmatprep.subr.bf16.mxu0 0
        %1116 = vmatpush1.bf16.msra.mxu0 %v1113
        %1117 = vmatprep.subr.bf16.mxu0 0
        %1118 = vmatpush1.bf16.msra.mxu0 0
        %1119 = vmatprep.subr.bf16.mxu0 0
        %1120 = vmatpush1.bf16.msra.mxu0 0
        %1121 = vmatprep.subr.bf16.mxu0 0
        %1122 = vmatpush1.bf16.msra.mxu0 0
        %1123 = vmatprep.subr.bf16.mxu0 0
        %1124 = vmatpush1.bf16.msra.mxu0 0
        %1125 = vmatprep.subr.bf16.mxu0 0
        %1126 = vmatpush1.bf16.msra.mxu0 0
        %1127 = vmatprep.subr.bf16.mxu0 0
        %1128 = vmatpush1.bf16.msra.mxu0 0
        %1129 = vmatprep.subr.bf16.mxu0 0
        %1130 = vmatpush1.bf16.msra.mxu0 0
        %1131 = vmatprep.subr.bf16.mxu0 0
        %1132 = vmatpush1.bf16.msra.mxu0 0
        %1133 = vmatprep.subr.bf16.mxu0 0
        %1134 = vmatpush1.bf16.msra.mxu0 0
        %1135 = vmatprep.subr.bf16.mxu0 0
        %1136 = vmatpush1.bf16.msra.mxu0 0
        %1137 = vmatprep.subr.bf16.mxu0 0
        %1138 = vmatpush1.bf16.msra.mxu0 0
        %1139 = vmatprep.subr.bf16.mxu0 0
        %1140 = vmatpush1.bf16.msra.mxu0 0
        %1141 = vmatprep.subr.bf16.mxu0 0
        %1142 = vmatpush1.bf16.msra.mxu0 0
        %1143 = vmatprep.subr.bf16.mxu0 0
        %1144 = vmatpush1.bf16.msra.mxu0 0
        %1145 = vmatprep.subr.bf16.mxu0 0
        %1146 = vmatpush1.bf16.msra.mxu0 0
        %1147 = vmatprep.mubr.bf16.mxu0 0
        %1148 = vmatmul.mubr.bf16.gmra.mrb[0].mxu0 %v1110
        %v1149 = vpop.f32.mrb[0].mxu0
        %v1150 = vadd.f32 %v1104, %v1149
        %v1151 = vpop.f32.mrb[0].mxu0
        %v1152 = vpop.f32.mrb[0].mxu0
        %v1153 = vpop.f32.mrb[0].mxu0
        %1154 = vdwg.mxu0
        %s1155 = scalar_lea.vmem [#allocation2], 8
        %v1156 = vld [vmem:[%s1155] sm:$0xf]
        %1157 = vrot.lane.b32.xlu0 %v838, 112
        %v1158 = vpop.permute.xlu0 %1157
        %v1160 = vsel %vm840, %v1158, 0
        %v1163 = vsel %vm844, %v1156, 0
        %1165 = vmatprep.subr.bf16.mxu0 0
        %1166 = vmatpush1.bf16.msra.mxu0 %v1163
        %1167 = vmatprep.subr.bf16.mxu0 0
        %1168 = vmatpush1.bf16.msra.mxu0 0
        %1169 = vmatprep.subr.bf16.mxu0 0
        %1170 = vmatpush1.bf16.msra.mxu0 0
        %1171 = vmatprep.subr.bf16.mxu0 0
        %1172 = vmatpush1.bf16.msra.mxu0 0
        %1173 = vmatprep.subr.bf16.mxu0 0
        %1174 = vmatpush1.bf16.msra.mxu0 0
        %1175 = vmatprep.subr.bf16.mxu0 0
        %1176 = vmatpush1.bf16.msra.mxu0 0
        %1177 = vmatprep.subr.bf16.mxu0 0
        %1178 = vmatpush1.bf16.msra.mxu0 0
        %1179 = vmatprep.subr.bf16.mxu0 0
        %1180 = vmatpush1.bf16.msra.mxu0 0
        %1181 = vmatprep.subr.bf16.mxu0 0
        %1182 = vmatpush1.bf16.msra.mxu0 0
        %1183 = vmatprep.subr.bf16.mxu0 0
        %1184 = vmatpush1.bf16.msra.mxu0 0
        %1185 = vmatprep.subr.bf16.mxu0 0
        %1186 = vmatpush1.bf16.msra.mxu0 0
        %1187 = vmatprep.subr.bf16.mxu0 0
        %1188 = vmatpush1.bf16.msra.mxu0 0
        %1189 = vmatprep.subr.bf16.mxu0 0
        %1190 = vmatpush1.bf16.msra.mxu0 0
        %1191 = vmatprep.subr.bf16.mxu0 0
        %1192 = vmatpush1.bf16.msra.mxu0 0
        %1193 = vmatprep.subr.bf16.mxu0 0
        %1194 = vmatpush1.bf16.msra.mxu0 0
        %1195 = vmatprep.subr.bf16.mxu0 0
        %1196 = vmatpush1.bf16.msra.mxu0 0
        %1197 = vmatprep.mubr.bf16.mxu0 0
        %1198 = vmatmul.mubr.bf16.gmra.mrb[0].mxu0 %v1160
        %v1199 = vpop.f32.mrb[0].mxu0
        %v1200 = vadd.f32 0.0, %v1199
        %v1201 = vpop.f32.mrb[0].mxu0
        %v1202 = vpop.f32.mrb[0].mxu0
        %v1203 = vpop.f32.mrb[0].mxu0
        %1204 = vdwg.mxu0
        %v1205 = vsel %vm840, %v1200, -inf
        %1206 = vmax.xlane.f32.xlu0 %v1205
        %v1207 = vpop.xlane.xlu0 %1206
        %v1208 = vsub.f32 %v1200, %v1207
        %v1209 = vmul.f32 %v1208, 1.442695
        %v1210 = vpow.pop %v1209
        %v1211 = vsel %vm840, %v1210, 0.0
        %1212 = vadd.xlane.f32.xlu0 %v1211
        %v1213 = vpop.xlane.xlu0 %1212
        %v1214 = vpack.c.bf16 %v1210, %v1210
        %s1215 = scalar_lea.vmem [#allocation3], 8
        %v1216 = vld [vmem:[%s1215] sm:$0xf]
        %v1218 = vsel %vm840, %v1214, 0
        %v1221 = vsel %vm844, %v1216, 0
        %1223 = vmatprep.subr.bf16.mxu0 0
        %1224 = vmatpush1.bf16.msra.mxu0 %v1221
        %1225 = vmatprep.subr.bf16.mxu0 0
        %1226 = vmatpush1.bf16.msra.mxu0 0
        %1227 = vmatprep.subr.bf16.mxu0 0
        %1228 = vmatpush1.bf16.msra.mxu0 0
        %1229 = vmatprep.subr.bf16.mxu0 0
        %1230 = vmatpush1.bf16.msra.mxu0 0
        %1231 = vmatprep.subr.bf16.mxu0 0
        %1232 = vmatpush1.bf16.msra.mxu0 0
        %1233 = vmatprep.subr.bf16.mxu0 0
        %1234 = vmatpush1.bf16.msra.mxu0 0
        %1235 = vmatprep.subr.bf16.mxu0 0
        %1236 = vmatpush1.bf16.msra.mxu0 0
        %1237 = vmatprep.subr.bf16.mxu0 0
        %1238 = vmatpush1.bf16.msra.mxu0 0
        %1239 = vmatprep.subr.bf16.mxu0 0
        %1240 = vmatpush1.bf16.msra.mxu0 0
        %1241 = vmatprep.subr.bf16.mxu0 0
        %1242 = vmatpush1.bf16.msra.mxu0 0
        %1243 = vmatprep.subr.bf16.mxu0 0
        %1244 = vmatpush1.bf16.msra.mxu0 0
        %1245 = vmatprep.subr.bf16.mxu0 0
        %1246 = vmatpush1.bf16.msra.mxu0 0
        %1247 = vmatprep.subr.bf16.mxu0 0
        %1248 = vmatpush1.bf16.msra.mxu0 0
        %1249 = vmatprep.subr.bf16.mxu0 0
        %1250 = vmatpush1.bf16.msra.mxu0 0
        %1251 = vmatprep.subr.bf16.mxu0 0
        %1252 = vmatpush1.bf16.msra.mxu0 0
        %1253 = vmatprep.subr.bf16.mxu0 0
        %1254 = vmatpush1.bf16.msra.mxu0 0
        %1255 = vmatprep.mubr.bf16.mxu0 0
        %1256 = vmatmul.mubr.bf16.gmra.mrb[0].mxu0 %v1218
        %v1257 = vpop.f32.mrb[0].mxu0
        %v1258 = vadd.f32 0.0, %v1257
        %v1259 = vpop.f32.mrb[0].mxu0
        %v1260 = vpop.f32.mrb[0].mxu0
        %v1261 = vpop.f32.mrb[0].mxu0
        %1262 = vdwg.mxu0
        %v1263 = vrcp.pop %v1213
        %v1264 = vmul.f32 %v1258, %v1263
        %v1265 = vpack.c.bf16 %v1264, %v1264
        %s1266 = scalar_lea.vmem [#allocation10], 8
        %v1267 = vld [vmem:[%s1266] sm:$0xf]
        %v1269 = vsel %vm840, %v1265, 0
        %v1272 = vsel %vm844, %v1267, 0
        %1274 = vmatprep.subr.bf16.mxu0 0
        %1275 = vmatpush1.bf16.msra.mxu0 %v1272
        %1276 = vmatprep.subr.bf16.mxu0 0
        %1277 = vmatpush1.bf16.msra.mxu0 0
        %1278 = vmatprep.subr.bf16.mxu0 0
        %1279 = vmatpush1.bf16.msra.mxu0 0
        %1280 = vmatprep.subr.bf16.mxu0 0
        %1281 = vmatpush1.bf16.msra.mxu0 0
        %1282 = vmatprep.subr.bf16.mxu0 0
        %1283 = vmatpush1.bf16.msra.mxu0 0
        %1284 = vmatprep.subr.bf16.mxu0 0
        %1285 = vmatpush1.bf16.msra.mxu0 0
        %1286 = vmatprep.subr.bf16.mxu0 0
        %1287 = vmatpush1.bf16.msra.mxu0 0
        %1288 = vmatprep.subr.bf16.mxu0 0
        %1289 = vmatpush1.bf16.msra.mxu0 0
        %1290 = vmatprep.subr.bf16.mxu0 0
        %1291 = vmatpush1.bf16.msra.mxu0 0
        %1292 = vmatprep.subr.bf16.mxu0 0
        %1293 = vmatpush1.bf16.msra.mxu0 0
        %1294 = vmatprep.subr.bf16.mxu0 0
        %1295 = vmatpush1.bf16.msra.mxu0 0
        %1296 = vmatprep.subr.bf16.mxu0 0
        %1297 = vmatpush1.bf16.msra.mxu0 0
        %1298 = vmatprep.subr.bf16.mxu0 0
        %1299 = vmatpush1.bf16.msra.mxu0 0
        %1300 = vmatprep.subr.bf16.mxu0 0
        %1301 = vmatpush1.bf16.msra.mxu0 0
        %1302 = vmatprep.subr.bf16.mxu0 0
        %1303 = vmatpush1.bf16.msra.mxu0 0
        %1304 = vmatprep.subr.bf16.mxu0 0
        %1305 = vmatpush1.bf16.msra.mxu0 0
        %1306 = vmatprep.mubr.bf16.mxu0 0
        %1307 = vmatmul.mubr.bf16.gmra.mrb[0].mxu0 %v1269
        %v1308 = vpop.f32.mrb[0].mxu0
        %v1309 = vadd.f32 0.0, %v1308
        %v1310 = vpop.f32.mrb[0].mxu0
        %v1311 = vpop.f32.mrb[0].mxu0
        %v1312 = vpop.f32.mrb[0].mxu0
        %1313 = vdwg.mxu0
        %v1314 = vadd.f32 %v1150, %v1309
        %s1315 = scalar_lea.vmem [#allocation2], 12
        %v1316 = vld [vmem:[%s1315] sm:$0xf]
        %1317 = vrot.lane.b32.xlu0 %v838, 104
        %v1318 = vpop.permute.xlu0 %1317
        %v1320 = vsel %vm840, %v1318, 0
        %v1323 = vsel %vm844, %v1316, 0
        %1325 = vmatprep.subr.bf16.mxu0 0
        %1326 = vmatpush1.bf16.msra.mxu0 %v1323
        %1327 = vmatprep.subr.bf16.mxu0 0
        %1328 = vmatpush1.bf16.msra.mxu0 0
        %1329 = vmatprep.subr.bf16.mxu0 0
        %1330 = vmatpush1.bf16.msra.mxu0 0
        %1331 = vmatprep.subr.bf16.mxu0 0
        %1332 = vmatpush1.bf16.msra.mxu0 0
        %1333 = vmatprep.subr.bf16.mxu0 0
        %1334 = vmatpush1.bf16.msra.mxu0 0
        %1335 = vmatprep.subr.bf16.mxu0 0
        %1336 = vmatpush1.bf16.msra.mxu0 0
        %1337 = vmatprep.subr.bf16.mxu0 0
        %1338 = vmatpush1.bf16.msra.mxu0 0
        %1339 = vmatprep.subr.bf16.mxu0 0
        %1340 = vmatpush1.bf16.msra.mxu0 0
        %1341 = vmatprep.subr.bf16.mxu0 0
        %1342 = vmatpush1.bf16.msra.mxu0 0
        %1343 = vmatprep.subr.bf16.mxu0 0
        %1344 = vmatpush1.bf16.msra.mxu0 0
        %1345 = vmatprep.subr.bf16.mxu0 0
        %1346 = vmatpush1.bf16.msra.mxu0 0
        %1347 = vmatprep.subr.bf16.mxu0 0
        %1348 = vmatpush1.bf16.msra.mxu0 0
        %1349 = vmatprep.subr.bf16.mxu0 0
        %1350 = vmatpush1.bf16.msra.mxu0 0
        %1351 = vmatprep.subr.bf16.mxu0 0
        %1352 = vmatpush1.bf16.msra.mxu0 0
        %1353 = vmatprep.subr.bf16.mxu0 0
        %1354 = vmatpush1.bf16.msra.mxu0 0
        %1355 = vmatprep.subr.bf16.mxu0 0
        %1356 = vmatpush1.bf16.msra.mxu0 0
        %1357 = vmatprep.mubr.bf16.mxu0 0
        %1358 = vmatmul.mubr.bf16.gmra.mrb[0].mxu0 %v1320
        %v1359 = vpop.f32.mrb[0].mxu0
        %v1360 = vadd.f32 0.0, %v1359
        %v1361 = vpop.f32.mrb[0].mxu0
        %v1362 = vpop.f32.mrb[0].mxu0
        %v1363 = vpop.f32.mrb[0].mxu0
        %1364 = vdwg.mxu0
        %v1365 = vsel %vm840, %v1360, -inf
        %1366 = vmax.xlane.f32.xlu0 %v1365
        %v1367 = vpop.xlane.xlu0 %1366
        %v1368 = vsub.f32 %v1360, %v1367
        %v1369 = vmul.f32 %v1368, 1.442695
        %v1370 = vpow.pop %v1369
        %v1371 = vsel %vm840, %v1370, 0.0
        %1372 = vadd.xlane.f32.xlu0 %v1371
        %v1373 = vpop.xlane.xlu0 %1372
        %v1374 = vpack.c.bf16 %v1370, %v1370
        %s1375 = scalar_lea.vmem [#allocation3], 12
        %v1376 = vld [vmem:[%s1375] sm:$0xf]
        %v1378 = vsel %vm840, %v1374, 0
        %v1381 = vsel %vm844, %v1376, 0
        %1383 = vmatprep.subr.bf16.mxu0 0
        %1384 = vmatpush1.bf16.msra.mxu0 %v1381
        %1385 = vmatprep.subr.bf16.mxu0 0
        %1386 = vmatpush1.bf16.msra.mxu0 0
        %1387 = vmatprep.subr.bf16.mxu0 0
        %1388 = vmatpush1.bf16.msra.mxu0 0
        %1389 = vmatprep.subr.bf16.mxu0 0
        %1390 = vmatpush1.bf16.msra.mxu0 0
        %1391 = vmatprep.subr.bf16.mxu0 0
        %1392 = vmatpush1.bf16.msra.mxu0 0
        %1393 = vmatprep.subr.bf16.mxu0 0
        %1394 = vmatpush1.bf16.msra.mxu0 0
        %1395 = vmatprep.subr.bf16.mxu0 0
        %1396 = vmatpush1.bf16.msra.mxu0 0
        %1397 = vmatprep.subr.bf16.mxu0 0
        %1398 = vmatpush1.bf16.msra.mxu0 0
        %1399 = vmatprep.subr.bf16.mxu0 0
        %1400 = vmatpush1.bf16.msra.mxu0 0
        %1401 = vmatprep.subr.bf16.mxu0 0
        %1402 = vmatpush1.bf16.msra.mxu0 0
        %1403 = vmatprep.subr.bf16.mxu0 0
        %1404 = vmatpush1.bf16.msra.mxu0 0
        %1405 = vmatprep.subr.bf16.mxu0 0
        %1406 = vmatpush1.bf16.msra.mxu0 0
        %1407 = vmatprep.subr.bf16.mxu0 0
        %1408 = vmatpush1.bf16.msra.mxu0 0
        %1409 = vmatprep.subr.bf16.mxu0 0
        %1410 = vmatpush1.bf16.msra.mxu0 0
        %1411 = vmatprep.subr.bf16.mxu0 0
        %1412 = vmatpush1.bf16.msra.mxu0 0
        %1413 = vmatprep.subr.bf16.mxu0 0
        %1414 = vmatpush1.bf16.msra.mxu0 0
        %1415 = vmatprep.mubr.bf16.mxu0 0
        %1416 = vmatmul.mubr.bf16.gmra.mrb[0].mxu0 %v1378
        %v1417 = vpop.f32.mrb[0].mxu0
        %v1418 = vadd.f32 0.0, %v1417
        %v1419 = vpop.f32.mrb[0].mxu0
        %v1420 = vpop.f32.mrb[0].mxu0
        %v1421 = vpop.f32.mrb[0].mxu0
        %1422 = vdwg.mxu0
        %v1423 = vrcp.pop %v1373
        %v1424 = vmul.f32 %v1418, %v1423
        %v1425 = vpack.c.bf16 %v1424, %v1424
        %s1426 = scalar_lea.vmem [#allocation10], 12
        %v1427 = vld [vmem:[%s1426] sm:$0xf]
        %v1429 = vsel %vm840, %v1425, 0
        %v1432 = vsel %vm844, %v1427, 0
        %1434 = vmatprep.subr.bf16.mxu0 0
        %1435 = vmatpush1.bf16.msra.mxu0 %v1432
        %1436 = vmatprep.subr.bf16.mxu0 0
        %1437 = vmatpush1.bf16.msra.mxu0 0
        %1438 = vmatprep.subr.bf16.mxu0 0
        %1439 = vmatpush1.bf16.msra.mxu0 0
        %1440 = vmatprep.subr.bf16.mxu0 0
        %1441 = vmatpush1.bf16.msra.mxu0 0
        %1442 = vmatprep.subr.bf16.mxu0 0
        %1443 = vmatpush1.bf16.msra.mxu0 0
        %1444 = vmatprep.subr.bf16.mxu0 0
        %1445 = vmatpush1.bf16.msra.mxu0 0
        %1446 = vmatprep.subr.bf16.mxu0 0
        %1447 = vmatpush1.bf16.msra.mxu0 0
        %1448 = vmatprep.subr.bf16.mxu0 0
        %1449 = vmatpush1.bf16.msra.mxu0 0
        %1450 = vmatprep.subr.bf16.mxu0 0
        %1451 = vmatpush1.bf16.msra.mxu0 0
        %1452 = vmatprep.subr.bf16.mxu0 0
        %1453 = vmatpush1.bf16.msra.mxu0 0
        %1454 = vmatprep.subr.bf16.mxu0 0
        %1455 = vmatpush1.bf16.msra.mxu0 0
        %1456 = vmatprep.subr.bf16.mxu0 0
        %1457 = vmatpush1.bf16.msra.mxu0 0
        %1458 = vmatprep.subr.bf16.mxu0 0
        %1459 = vmatpush1.bf16.msra.mxu0 0
        %1460 = vmatprep.subr.bf16.mxu0 0
        %1461 = vmatpush1.bf16.msra.mxu0 0
        %1462 = vmatprep.subr.bf16.mxu0 0
        %1463 = vmatpush1.bf16.msra.mxu0 0
        %1464 = vmatprep.subr.bf16.mxu0 0
        %1465 = vmatpush1.bf16.msra.mxu0 0
        %1466 = vmatprep.mubr.bf16.mxu0 0
        %1467 = vmatmul.mubr.bf16.gmra.mrb[0].mxu0 %v1429
        %v1468 = vpop.f32.mrb[0].mxu0
        %v1469 = vadd.f32 0.0, %v1468
        %v1470 = vpop.f32.mrb[0].mxu0
        %v1471 = vpop.f32.mrb[0].mxu0
        %v1472 = vpop.f32.mrb[0].mxu0
        %1473 = vdwg.mxu0
        %v1474 = vadd.f32 %v1314, %v1469
        %v1475 = vld [vmem:[%s8] sm:$0x1]
        %v1477 = vlaneseq
        %v1478 = vshrl.u32 %v1477, 7
        %v1479 = vsub.s32 0, %v1478
        %v1480 = vrot.slane %v1475, %v1479
        %v1482 = vadd.f32 %v1474, %v1480
        %v1483 = vadd.f32 %v1482, %v769
        %v1484 = vsel %vm794, %v1483, 0.0
        %1485 = vadd.xlane.f32.xlu0 %v1484
        %v1486 = vpop.xlane.xlu0 %1485
        %v1487 = vrcp.pop 32.0
        %v1488 = vmul.f32 %v1486, %v1487
        %v1489 = vsub.f32 %v1483, %v1488
        %v1490 = vmul.f32 %v1489, %v1489
        %v1491 = vsel %vm794, %v1490, 0.0
        %1492 = vadd.xlane.f32.xlu0 %v1491
        %v1493 = vpop.xlane.xlu0 %1492
        %v1494 = vmul.f32 %v1493, %v1487
        %v1495 = vadd.f32 %v1494, 1e-05
        %v1496 = vrsqrt.pop %v1495
        %v1497 = vmul.f32 %v1489, %v1496
        %v1498 = vld [vmem:[%s9] sm:$0x1]
        %v1500 = vlaneseq
        %v1501 = vshrl.u32 %v1500, 7
        %v1502 = vsub.s32 0, %v1501
        %v1503 = vrot.slane %v1498, %v1502
        %v1505 = vmul.f32 %v1497, %v1503
        %v1506 = vld [vmem:[%s10] sm:$0x1]
        %v1508 = vlaneseq
        %v1509 = vshrl.u32 %v1508, 7
        %v1510 = vsub.s32 0, %v1509
        %v1511 = vrot.slane %v1506, %v1510
        %v1513 = vadd.f32 %v1505, %v1511
        %1514 = vst.msk [vmem:[%s459] sm:$0xff] %vm794, %v1513
        %s1515 = sand.u32 %s288, 1
        %s1516 = scalar_lea.sflag [#allocation6], %s1515
        %s1517 = sand.u32 %s288, 1
        %s1518 = smul.addr %s1517, 8
        %s1519 = scalar_lea.vmem [#allocation12], %s1518
        // Predicated region
        $region85: #{tpu_custom_call.1} parent=63 // pred_check
          %p1520 = pneg %p298
        $region86: #{tpu_custom_call.1} parent=63 // pred_check_branch
          %1522 = sbr.rel (%p1520) target = $region88
        $region87: #{tpu_custom_call.1} parent=63 // pred_region
          %s1524 = ssub.s32 128, 128
          %1525 = vsyncadd %s1516, %s1524
          %s1526 = sadd.s32 %s35, %s34
          %s1527 = smul.addr %s1526, 128
          %s1528 = scalar_lea.hbm %s11, %s1527
          %s1530 = sshll.u32 %s1519, 4
          %s1531 = int_to_ptr.vmem [resolvable:$true] %s1530
          %1533 = dma.vmem_to_hbm [thread:$0]  %s1531, 128, %s1528, %s1516
        $region88: #{tpu_custom_call.1} parent=63 // pred_fallthru
          _
      $region64: #{tpu_custom_call.1} parent=5 // pred_fallthru
        _
      %p1534 = scmp.le.s32.totalorder 2, %s25
      // Predicated region
      $region89: #{tpu_custom_call.1} parent=5 // pred_check
        %p1535 = pneg %p1534
      $region90: #{tpu_custom_call.1} parent=5 // pred_check_branch
        %1537 = sbr.rel (%p1535) target = $region92
      $region91: #{tpu_custom_call.1} parent=5 // pred_region
        %s1538 = ssub.s32 %s25, 2
        // Predicated region
        $region93: #{tpu_custom_call.1} parent=91 // pred_check
          %p1539 = pneg %p304
        $region94: #{tpu_custom_call.1} parent=91 // pred_check_branch
          %1541 = sbr.rel (%p1539) target = $region96
        $region95: #{tpu_custom_call.1} parent=91 // pred_region
          %s1542 = sand.u32 %s289, 1
          %s1543 = scalar_lea.sflag [#allocation6], %s1542
          %s1544 = sand.u32 %s289, 1
          %s1545 = smul.addr %s1544, 8
          %s1546 = scalar_lea.vmem [#allocation12], %s1545
          %1547 = dma.done %s1543, 128
        $region96: #{tpu_custom_call.1} parent=91 // pred_fallthru
          _
      $region92: #{tpu_custom_call.1} parent=5 // pred_fallthru
        _
    $region6: #{tpu_custom_call.1} parent=1 // loop_footer
      %s29 = sadd.s32 1, %s25
    $region7: #{tpu_custom_call.1} parent=1 // loop_footer_branch
      %24 = sbr.rel target = $region3
    $region8: #{tpu_custom_call.1} parent=1 // loop_exit
      _
    %1548 = vsyncpa [#allocation5], 1
    %s1549 = scalar_lea.sflag [#allocation5], 1
    %1550 = vsyncpa %s1549, 1
    %1551 = vsyncpa [#allocation8], 1
    %1552 = vsyncpa [#allocation11], 1
    %1553 = vsyncpa [#allocation6], 1
    %s1554 = scalar_lea.sflag [#allocation6], 1
    %1555 = vsyncpa %s1554, 1

</llo_original>
